<compile_context>
chip_gen: v7x
topology: tpu7x:2x2x1
jax: 0.10.0
libtpu: 0.0.40
codegen_flags: <defaults>
</compile_context>

<pallas_src>
import functools

import jax
import jax.numpy as jnp
import numpy as np
from jax import lax
from jax.experimental import pallas as pl
from jax.experimental.pallas import tpu as pltpu


# ----------------------------- Pallas kernel ------------------------------- #

def _causal_conv_relu(y, w_ref, b_ref, k, d, T, lane_t, dot_dtype):
    """Causal dilated conv + bias + ReLU on a (C_in, Lpad) activation slab.

    y      : (C_in, Lpad) f32 activation, lane index = b*T + t (zero-padded
             past B*T up to the 128-multiple Lpad).
    w_ref  : (k, C_out, C_in) tap-major weight ref.
    Tap j needs the activation shifted right by s = (k-1-j)*d with zero
    (causal) left padding *per batch element*:  one whole-slab roll + one
    broadcast lane-mask multiply + one small MXU matmul per tap.  No
    sub-128-lane stores, no tap-stack scratch.
    """
    yc = y.astype(dot_dtype)
    acc = None
    for j in range(k):
        s = (k - 1 - j) * d
        if s >= T:
            continue                                   # tap entirely in the causal pad
        if s == 0:
            tap = yc                                   # last tap: unshifted
        else:
            rolled = pltpu.roll(yc, shift=s, axis=1)   # rolled[:, l] = yc[:, l-s]
            # Zero the first s timesteps of every batch element (causal pad);
            # also prevents batch b-1's tail leaking into batch b via the roll.
            tap = rolled * (lane_t >= s).astype(dot_dtype)
        contrib = jnp.dot(w_ref[j], tap, preferred_element_type=jnp.float32)
        acc = contrib if acc is None else acc + contrib
    return jnp.maximum(acc + b_ref[...], 0.0)


def tcn_fused_kernel(has_ds_flags, k, T, Lpad, dot_dtype, x_ref, *refs):
    """Fused TCN forward: all TemporalBlocks + FC head, activations in VMEM.

    x_ref : (C0, Lpad) input slab (batch folded into lanes, lane = b*T + t,
            zero-padded to a multiple of 128 lanes)
    refs  : per layer [w1 (k,C_out,C_in), b1 (C_out,1), w2 (k,C_out,C_out),
            b2 (C_out,1), (wd (C_out,C_in), bd (C_out,1) if downsample)],
            then w_fc (1,C_last), b_fc (1,1), o_ref (1,Lpad).
    """
    refs = list(refs)
    pos = 0
    layer_refs = []
    for has_ds in has_ds_flags:
        n = 6 if has_ds else 4
        layer_refs.append(refs[pos:pos + n])
        pos += n
    w_fc_ref, b_fc_ref, o_ref = refs[pos], refs[pos + 1], refs[pos + 2]

    # Hoisted once (JAX does not CSE broadcast_in_dim): time-within-batch
    # index of every lane.  Padded lanes (>= B*T) never feed real lanes
    # because the roll only looks backwards within the same batch element.
    lane_t = lax.broadcasted_iota(jnp.int32, (1, Lpad), 1) % T

    y = x_ref[...].astype(jnp.float32)                 # (C0, Lpad), VMEM-resident
    for i, (has_ds, lrefs) in enumerate(zip(has_ds_flags, layer_refs)):
        d = 2 ** i
        w1_ref, b1_ref, w2_ref, b2_ref = lrefs[:4]
        x_in = y
        h = _causal_conv_relu(x_in, w1_ref, b1_ref, k, d, T, lane_t, dot_dtype)
        out = _causal_conv_relu(h, w2_ref, b2_ref, k, d, T, lane_t, dot_dtype)
        if has_ds:
            wd_ref, bd_ref = lrefs[4], lrefs[5]
            res = jnp.dot(wd_ref[...], x_in.astype(dot_dtype),
                          preferred_element_type=jnp.float32) + bd_ref[...]
        else:
            res = x_in
        # This module's TemporalBlock returns out + res (no post-residual ReLU).
        y = out + res

    # FC head folded in: applied along the whole 128-multiple lane axis so the
    # store is a full-width unmasked vst; the wrapper keeps the t = T-1 column
    # of each batch element.
    # TODO(synk): at real sizes emit only the last-timestep columns (shape
    # (1, B)) instead of the full (1, Lpad) slab to cut HBM writeback by T x.
    o_ref[...] = jnp.dot(w_fc_ref[...], y.astype(dot_dtype),
                         preferred_element_type=jnp.float32) + b_fc_ref[...]


# ------------------------------ JAX wrapper --------------------------------- #

def tcn_forward(x, block_params, fc_params, kernel_size, dot_dtype=jnp.float32):
    """x: (B, C0, T) -> (B, 1). Whole network in one pallas_call."""
    B, C0, T = x.shape
    k = kernel_size
    BT = B * T
    Lpad = max(128, ((BT + 127) // 128) * 128)         # lane-dense lane axis

    # Fold batch into lanes: (C0, B*T) with lane = b*T + t, zero-pad to Lpad.
    # TODO(synk): at real sizes deliver per-batch (C0, T) tiles via the grid /
    # BlockSpec (grid over lane-blocks of whole batch elements, >=128 lanes,
    # dimension_semantics=("parallel",)) instead of this wrapper transpose.
    x2d = jnp.transpose(x, (1, 0, 2)).reshape(C0, BT)
    x2d = jnp.pad(x2d, ((0, 0), (0, Lpad - BT)))

    args = [x2d]
    has_ds_flags = []
    chans = []
    c_in = C0
    for (w1, b1, w2, b2, wd, bd) in block_params:
        c_out = w1.shape[0]
        # Tap-major weights (k, C_out, C_in): the kernel does one small MXU
        # matmul per tap (contraction dims here are tiny; stacking buys nothing).
        w1t = jnp.transpose(w1, (2, 0, 1)).astype(dot_dtype)
        w2t = jnp.transpose(w2, (2, 0, 1)).astype(dot_dtype)
        args += [w1t, b1.reshape(c_out, 1), w2t, b2.reshape(c_out, 1)]
        has_ds = wd is not None
        if has_ds:
            args += [wd[:, :, 0].astype(dot_dtype), bd.reshape(c_out, 1)]
        has_ds_flags.append(has_ds)
        chans.append((c_in, c_out))
        c_in = c_out

    w_fc, b_fc = fc_params
    args += [w_fc.astype(dot_dtype), b_fc.reshape(1, 1)]

    # Explicit scoped-VMEM budget: weights + a handful of live f32 activation
    # slabs (no tap-stack scratch any more), with a generous floor.
    arg_bytes = sum(int(a.size) * a.dtype.itemsize for a in args)
    max_c = max([C0] + [co for _, co in chans])
    live_bytes = 8 * max_c * Lpad * 4
    vmem_limit = int(min(32 << 20, max(16 << 20, 2 * (arg_bytes + live_bytes))))

    kernel = functools.partial(tcn_fused_kernel, tuple(has_ds_flags),
                               k, T, Lpad, dot_dtype)
    out2d = pl.pallas_call(
        kernel,
        out_shape=jax.ShapeDtypeStruct((1, Lpad), jnp.float32),
        in_specs=[pl.BlockSpec(memory_space=pltpu.MemorySpace.VMEM)
                  for _ in args],
        out_specs=pl.BlockSpec(memory_space=pltpu.MemorySpace.VMEM),
        compiler_params=pltpu.CompilerParams(vmem_limit_bytes=vmem_limit),
    )(*args)

    # Keep the last timestep of each batch element -> (B, 1).
    return out2d[0, :BT].reshape(B, T)[:, -1:]


# --------------------------- deterministic params --------------------------- #

def _init_conv(key, c_out, c_in, k):
    kw, kb = jax.random.split(key)
    bound = 1.0 / np.sqrt(c_in * k)
    w = jax.random.uniform(kw, (c_out, c_in, k), jnp.float32, -bound, bound)
    b = jax.random.uniform(kb, (c_out,), jnp.float32, -bound, bound)
    # PyTorch weight_norm at init sets g = ||v||, so the effective forward
    # weight equals v; for a forward-only comparison we use v directly.
    return w, b


def init_tcn(key, num_inputs, num_channels, kernel_size):
    block_params = []
    for i, ch in enumerate(num_channels):
        in_ch = num_inputs if i == 0 else num_channels[i - 1]
        key, k1, k2, k3 = jax.random.split(key, 4)
        w1, b1 = _init_conv(k1, ch, in_ch, kernel_size)
        w2, b2 = _init_conv(k2, ch, ch, kernel_size)
        if in_ch != ch:
            wd, bd = _init_conv(k3, ch, in_ch, 1)
        else:
            wd, bd = None, None
        block_params.append((w1, b1, w2, b2, wd, bd))
    key, kfw, kfb = jax.random.split(key, 3)
    bound = 1.0 / np.sqrt(num_channels[-1])
    w_fc = jax.random.uniform(kfw, (1, num_channels[-1]), jnp.float32, -bound, bound)
    b_fc = jax.random.uniform(kfb, (1,), jnp.float32, -bound, bound)
    return block_params, (w_fc, b_fc)


# ------------------------------ pure-JAX reference -------------------------- #

def _causal_conv_ref(x, w, b, dilation, k):
    pad = (k - 1) * dilation
    xp = jnp.pad(x, ((0, 0), (0, 0), (pad, 0)))
    y = lax.conv_general_dilated(xp, w, window_strides=(1,), padding='VALID',
                                 rhs_dilation=(dilation,),
                                 dimension_numbers=('NCH', 'OIH', 'NCH'))
    return y + b[None, :, None]


def tcn_reference(x, block_params, fc_params, kernel_size):
    y = x
    for i, (w1, b1, w2, b2, wd, bd) in enumerate(block_params):
        d = 2 ** i
        h = jax.nn.relu(_causal_conv_ref(y, w1, b1, d, kernel_size))
        o = jax.nn.relu(_causal_conv_ref(h, w2, b2, d, kernel_size))
        if wd is not None:
            res = lax.conv_general_dilated(y, wd, (1,), 'VALID',
                                           dimension_numbers=('NCH', 'OIH', 'NCH'))
            res = res + bd[None, :, None]
        else:
            res = y
        y = o + res
    last = y[:, :, -1]
    w_fc, b_fc = fc_params
    return last @ w_fc.T + b_fc


# ----------------------------------- main ----------------------------------- #

if __name__ == "__main__":
    key = jax.random.PRNGKey(0)
    B, num_inputs, T = 2, 4, 16
    num_channels = [8, 8]
    kernel_size = 3                       # dropout=0.0 (default) -> identity

    kx, kp = jax.random.split(key)
    x = jax.random.normal(kx, (B, num_inputs, T), jnp.float32)
    block_params, fc_params = init_tcn(kp, num_inputs, num_channels, kernel_size)

    out = tcn_forward(x, block_params, fc_params, kernel_size)
    out = jax.block_until_ready(out)
    assert out.shape == (B, 1)

    ref = tcn_reference(x, block_params, fc_params, kernel_size)
    np.testing.assert_allclose(np.asarray(out), np.asarray(ref), rtol=1e-4, atol=1e-4)
    print("KERNEL_OK")
</pallas_src>

<mosaic_0001>
module attributes {stable_mosaic.version = 11 : i64} {
  func.func @tcn_fused_kernel(%arg0: memref<4x128xf32, #tpu.memory_space<vmem>>, %arg1: memref<3x8x4xf32, #tpu.memory_space<vmem>>, %arg2: memref<8x1xf32, #tpu.memory_space<vmem>>, %arg3: memref<3x8x8xf32, #tpu.memory_space<vmem>>, %arg4: memref<8x1xf32, #tpu.memory_space<vmem>>, %arg5: memref<8x4xf32, #tpu.memory_space<vmem>>, %arg6: memref<8x1xf32, #tpu.memory_space<vmem>>, %arg7: memref<3x8x8xf32, #tpu.memory_space<vmem>>, %arg8: memref<8x1xf32, #tpu.memory_space<vmem>>, %arg9: memref<3x8x8xf32, #tpu.memory_space<vmem>>, %arg10: memref<8x1xf32, #tpu.memory_space<vmem>>, %arg11: memref<1x8xf32, #tpu.memory_space<vmem>>, %arg12: memref<1x1xf32, #tpu.memory_space<vmem>>, %arg13: memref<1x128xf32, #tpu.memory_space<vmem>>) attributes {dimension_semantics = [], scalar_prefetch = 0 : i64, scratch_operands = 0 : i64, tpu.core_type = #tpu.core_type<tc>} {
    %0 = tpu.iota {dimensions = array<i32: 1>} : vector<1x128xi32>
    %c16_i32 = arith.constant 16 : i32
    %c0_i32 = arith.constant 0 : i32
    %1 = arith.cmpi eq, %c16_i32, %c0_i32 : i32
    %c1_i32 = arith.constant 1 : i32
    %2 = arith.select %1, %c1_i32, %c16_i32 : i32
    %3 = vector.broadcast %2 : i32 to vector<1x128xi32>
    %4 = arith.remsi %0, %3 : vector<1x128xi32>
    %c0_i32_0 = arith.constant 0 : i32
    %5 = vector.broadcast %c0_i32_0 : i32 to vector<1x128xi32>
    %6 = arith.cmpi ne, %4, %5 : vector<1x128xi32>
    %c0_i32_1 = arith.constant 0 : i32
    %7 = vector.broadcast %c0_i32_1 : i32 to vector<1x128xi32>
    %8 = arith.cmpi slt, %4, %7 : vector<1x128xi32>
    %c0_i32_2 = arith.constant 0 : i32
    %9 = arith.cmpi slt, %2, %c0_i32_2 : i32
    %10 = vector.broadcast %9 : i1 to vector<1x128xi1>
    %11 = vector.broadcast %10 : vector<1x128xi1> to vector<1x128xi1>
    %12 = arith.xori %8, %11 : vector<1x128xi1>
    %13 = arith.andi %12, %6 : vector<1x128xi1>
    %14 = vector.broadcast %2 : i32 to vector<1x128xi32>
    %15 = arith.addi %4, %14 : vector<1x128xi32>
    %16 = arith.select %13, %15, %4 : vector<1x128xi1>, vector<1x128xi32>
    %c0 = arith.constant 0 : index
    %c0_3 = arith.constant 0 : index
    %17 = vector.load %arg0[%c0, %c0_3] : memref<4x128xf32, #tpu.memory_space<vmem>>, vector<4x128xf32>
    %c2_i32 = arith.constant 2 : i32
    %18 = tpu.dynamic_rotate %17 by %c2_i32 dim 1 : vector<4x128xf32>, i32 -> vector<4x128xf32>
    %c2_i32_4 = arith.constant 2 : i32
    %19 = vector.broadcast %c2_i32_4 : i32 to vector<1x128xi32>
    %20 = arith.cmpi sge, %16, %19 : vector<1x128xi32>
    %21 = arith.extui %20 : vector<1x128xi1> to vector<1x128xi32>
    %22 = arith.sitofp %21 : vector<1x128xi32> to vector<1x128xf32>
    %23 = vector.broadcast %22 : vector<1x128xf32> to vector<4x128xf32>
    %24 = arith.mulf %18, %23 : vector<4x128xf32>
    %c0_5 = arith.constant 0 : index
    %c0_6 = arith.constant 0 : index
    %c0_7 = arith.constant 0 : index
    %25 = vector.load %arg1[%c0_5, %c0_6, %c0_7] : memref<3x8x4xf32, #tpu.memory_space<vmem>>, vector<1x8x4xf32>
    %26 = vector.shape_cast %25 : vector<1x8x4xf32> to vector<8x4xf32>
    %cst = arith.constant dense<0.000000e+00> : vector<8x128xf32>
    %27 = tpu.matmul %26, %24, %cst {dimension_numbers = #tpu.dot_dimension_numbers<[1], [0], [0], [1], [0, 0, 1, 1], [], []>} : vector<8x4xf32>, vector<4x128xf32>, vector<8x128xf32> -> vector<8x128xf32>
    %c1_i32_8 = arith.constant 1 : i32
    %28 = tpu.dynamic_rotate %17 by %c1_i32_8 dim 1 : vector<4x128xf32>, i32 -> vector<4x128xf32>
    %c1_i32_9 = arith.constant 1 : i32
    %29 = vector.broadcast %c1_i32_9 : i32 to vector<1x128xi32>
    %30 = arith.cmpi sge, %16, %29 : vector<1x128xi32>
    %31 = arith.extui %30 : vector<1x128xi1> to vector<1x128xi32>
    %32 = arith.sitofp %31 : vector<1x128xi32> to vector<1x128xf32>
    %33 = vector.broadcast %32 : vector<1x128xf32> to vector<4x128xf32>
    %34 = arith.mulf %28, %33 : vector<4x128xf32>
    %c1 = arith.constant 1 : index
    %c0_10 = arith.constant 0 : index
    %c0_11 = arith.constant 0 : index
    %35 = vector.load %arg1[%c1, %c0_10, %c0_11] : memref<3x8x4xf32, #tpu.memory_space<vmem>>, vector<1x8x4xf32>
    %36 = vector.shape_cast %35 : vector<1x8x4xf32> to vector<8x4xf32>
    %cst_12 = arith.constant dense<0.000000e+00> : vector<8x128xf32>
    %37 = tpu.matmul %36, %34, %cst_12 {dimension_numbers = #tpu.dot_dimension_numbers<[1], [0], [0], [1], [0, 0, 1, 1], [], []>} : vector<8x4xf32>, vector<4x128xf32>, vector<8x128xf32> -> vector<8x128xf32>
    %38 = arith.addf %27, %37 : vector<8x128xf32>
    %c2 = arith.constant 2 : index
    %c0_13 = arith.constant 0 : index
    %c0_14 = arith.constant 0 : index
    %39 = vector.load %arg1[%c2, %c0_13, %c0_14] : memref<3x8x4xf32, #tpu.memory_space<vmem>>, vector<1x8x4xf32>
    %40 = vector.shape_cast %39 : vector<1x8x4xf32> to vector<8x4xf32>
    %cst_15 = arith.constant dense<0.000000e+00> : vector<8x128xf32>
    %41 = tpu.matmul %40, %17, %cst_15 {dimension_numbers = #tpu.dot_dimension_numbers<[1], [0], [0], [1], [0, 0, 1, 1], [], []>} : vector<8x4xf32>, vector<4x128xf32>, vector<8x128xf32> -> vector<8x128xf32>
    %42 = arith.addf %38, %41 : vector<8x128xf32>
    %c0_16 = arith.constant 0 : index
    %c0_17 = arith.constant 0 : index
    %43 = vector.load %arg2[%c0_16, %c0_17] : memref<8x1xf32, #tpu.memory_space<vmem>>, vector<8x1xf32>
    %44 = vector.broadcast %43 : vector<8x1xf32> to vector<8x128xf32>
    %45 = arith.addf %42, %44 : vector<8x128xf32>
    %cst_18 = arith.constant 0.000000e+00 : f32
    %46 = vector.broadcast %cst_18 : f32 to vector<8x128xf32>
    %47 = arith.maximumf %45, %46 : vector<8x128xf32>
    %c2_i32_19 = arith.constant 2 : i32
    %48 = tpu.dynamic_rotate %47 by %c2_i32_19 dim 1 : vector<8x128xf32>, i32 -> vector<8x128xf32>
    %c2_i32_20 = arith.constant 2 : i32
    %49 = vector.broadcast %c2_i32_20 : i32 to vector<1x128xi32>
    %50 = arith.cmpi sge, %16, %49 : vector<1x128xi32>
    %51 = arith.extui %50 : vector<1x128xi1> to vector<1x128xi32>
    %52 = arith.sitofp %51 : vector<1x128xi32> to vector<1x128xf32>
    %53 = vector.broadcast %52 : vector<1x128xf32> to vector<8x128xf32>
    %54 = arith.mulf %48, %53 : vector<8x128xf32>
    %c0_21 = arith.constant 0 : index
    %c0_22 = arith.constant 0 : index
    %c0_23 = arith.constant 0 : index
    %55 = vector.load %arg3[%c0_21, %c0_22, %c0_23] : memref<3x8x8xf32, #tpu.memory_space<vmem>>, vector<1x8x8xf32>
    %56 = vector.shape_cast %55 : vector<1x8x8xf32> to vector<8x8xf32>
    %cst_24 = arith.constant dense<0.000000e+00> : vector<8x128xf32>
    %57 = tpu.matmul %56, %54, %cst_24 {dimension_numbers = #tpu.dot_dimension_numbers<[1], [0], [0], [1], [0, 0, 1, 1], [], []>} : vector<8x8xf32>, vector<8x128xf32>, vector<8x128xf32> -> vector<8x128xf32>
    %c1_i32_25 = arith.constant 1 : i32
    %58 = tpu.dynamic_rotate %47 by %c1_i32_25 dim 1 : vector<8x128xf32>, i32 -> vector<8x128xf32>
    %c1_i32_26 = arith.constant 1 : i32
    %59 = vector.broadcast %c1_i32_26 : i32 to vector<1x128xi32>
    %60 = arith.cmpi sge, %16, %59 : vector<1x128xi32>
    %61 = arith.extui %60 : vector<1x128xi1> to vector<1x128xi32>
    %62 = arith.sitofp %61 : vector<1x128xi32> to vector<1x128xf32>
    %63 = vector.broadcast %62 : vector<1x128xf32> to vector<8x128xf32>
    %64 = arith.mulf %58, %63 : vector<8x128xf32>
    %c1_27 = arith.constant 1 : index
    %c0_28 = arith.constant 0 : index
    %c0_29 = arith.constant 0 : index
    %65 = vector.load %arg3[%c1_27, %c0_28, %c0_29] : memref<3x8x8xf32, #tpu.memory_space<vmem>>, vector<1x8x8xf32>
    %66 = vector.shape_cast %65 : vector<1x8x8xf32> to vector<8x8xf32>
    %cst_30 = arith.constant dense<0.000000e+00> : vector<8x128xf32>
    %67 = tpu.matmul %66, %64, %cst_30 {dimension_numbers = #tpu.dot_dimension_numbers<[1], [0], [0], [1], [0, 0, 1, 1], [], []>} : vector<8x8xf32>, vector<8x128xf32>, vector<8x128xf32> -> vector<8x128xf32>
    %68 = arith.addf %57, %67 : vector<8x128xf32>
    %c2_31 = arith.constant 2 : index
    %c0_32 = arith.constant 0 : index
    %c0_33 = arith.constant 0 : index
    %69 = vector.load %arg3[%c2_31, %c0_32, %c0_33] : memref<3x8x8xf32, #tpu.memory_space<vmem>>, vector<1x8x8xf32>
    %70 = vector.shape_cast %69 : vector<1x8x8xf32> to vector<8x8xf32>
    %cst_34 = arith.constant dense<0.000000e+00> : vector<8x128xf32>
    %71 = tpu.matmul %70, %47, %cst_34 {dimension_numbers = #tpu.dot_dimension_numbers<[1], [0], [0], [1], [0, 0, 1, 1], [], []>} : vector<8x8xf32>, vector<8x128xf32>, vector<8x128xf32> -> vector<8x128xf32>
    %72 = arith.addf %68, %71 : vector<8x128xf32>
    %c0_35 = arith.constant 0 : index
    %c0_36 = arith.constant 0 : index
    %73 = vector.load %arg4[%c0_35, %c0_36] : memref<8x1xf32, #tpu.memory_space<vmem>>, vector<8x1xf32>
    %74 = vector.broadcast %73 : vector<8x1xf32> to vector<8x128xf32>
    %75 = arith.addf %72, %74 : vector<8x128xf32>
    %cst_37 = arith.constant 0.000000e+00 : f32
    %76 = vector.broadcast %cst_37 : f32 to vector<8x128xf32>
    %77 = arith.maximumf %75, %76 : vector<8x128xf32>
    %c0_38 = arith.constant 0 : index
    %c0_39 = arith.constant 0 : index
    %78 = vector.load %arg5[%c0_38, %c0_39] : memref<8x4xf32, #tpu.memory_space<vmem>>, vector<8x4xf32>
    %cst_40 = arith.constant dense<0.000000e+00> : vector<8x128xf32>
    %79 = tpu.matmul %78, %17, %cst_40 {dimension_numbers = #tpu.dot_dimension_numbers<[1], [0], [0], [1], [0, 0, 1, 1], [], []>} : vector<8x4xf32>, vector<4x128xf32>, vector<8x128xf32> -> vector<8x128xf32>
    %c0_41 = arith.constant 0 : index
    %c0_42 = arith.constant 0 : index
    %80 = vector.load %arg6[%c0_41, %c0_42] : memref<8x1xf32, #tpu.memory_space<vmem>>, vector<8x1xf32>
    %81 = vector.broadcast %80 : vector<8x1xf32> to vector<8x128xf32>
    %82 = arith.addf %79, %81 : vector<8x128xf32>
    %83 = arith.addf %77, %82 : vector<8x128xf32>
    %c4_i32 = arith.constant 4 : i32
    %84 = tpu.dynamic_rotate %83 by %c4_i32 dim 1 : vector<8x128xf32>, i32 -> vector<8x128xf32>
    %c4_i32_43 = arith.constant 4 : i32
    %85 = vector.broadcast %c4_i32_43 : i32 to vector<1x128xi32>
    %86 = arith.cmpi sge, %16, %85 : vector<1x128xi32>
    %87 = arith.extui %86 : vector<1x128xi1> to vector<1x128xi32>
    %88 = arith.sitofp %87 : vector<1x128xi32> to vector<1x128xf32>
    %89 = vector.broadcast %88 : vector<1x128xf32> to vector<8x128xf32>
    %90 = arith.mulf %84, %89 : vector<8x128xf32>
    %c0_44 = arith.constant 0 : index
    %c0_45 = arith.constant 0 : index
    %c0_46 = arith.constant 0 : index
    %91 = vector.load %arg7[%c0_44, %c0_45, %c0_46] : memref<3x8x8xf32, #tpu.memory_space<vmem>>, vector<1x8x8xf32>
    %92 = vector.shape_cast %91 : vector<1x8x8xf32> to vector<8x8xf32>
    %cst_47 = arith.constant dense<0.000000e+00> : vector<8x128xf32>
    %93 = tpu.matmul %92, %90, %cst_47 {dimension_numbers = #tpu.dot_dimension_numbers<[1], [0], [0], [1], [0, 0, 1, 1], [], []>} : vector<8x8xf32>, vector<8x128xf32>, vector<8x128xf32> -> vector<8x128xf32>
    %c2_i32_48 = arith.constant 2 : i32
    %94 = tpu.dynamic_rotate %83 by %c2_i32_48 dim 1 : vector<8x128xf32>, i32 -> vector<8x128xf32>
    %c2_i32_49 = arith.constant 2 : i32
    %95 = vector.broadcast %c2_i32_49 : i32 to vector<1x128xi32>
    %96 = arith.cmpi sge, %16, %95 : vector<1x128xi32>
    %97 = arith.extui %96 : vector<1x128xi1> to vector<1x128xi32>
    %98 = arith.sitofp %97 : vector<1x128xi32> to vector<1x128xf32>
    %99 = vector.broadcast %98 : vector<1x128xf32> to vector<8x128xf32>
    %100 = arith.mulf %94, %99 : vector<8x128xf32>
    %c1_50 = arith.constant 1 : index
    %c0_51 = arith.constant 0 : index
    %c0_52 = arith.constant 0 : index
    %101 = vector.load %arg7[%c1_50, %c0_51, %c0_52] : memref<3x8x8xf32, #tpu.memory_space<vmem>>, vector<1x8x8xf32>
    %102 = vector.shape_cast %101 : vector<1x8x8xf32> to vector<8x8xf32>
    %cst_53 = arith.constant dense<0.000000e+00> : vector<8x128xf32>
    %103 = tpu.matmul %102, %100, %cst_53 {dimension_numbers = #tpu.dot_dimension_numbers<[1], [0], [0], [1], [0, 0, 1, 1], [], []>} : vector<8x8xf32>, vector<8x128xf32>, vector<8x128xf32> -> vector<8x128xf32>
    %104 = arith.addf %93, %103 : vector<8x128xf32>
    %c2_54 = arith.constant 2 : index
    %c0_55 = arith.constant 0 : index
    %c0_56 = arith.constant 0 : index
    %105 = vector.load %arg7[%c2_54, %c0_55, %c0_56] : memref<3x8x8xf32, #tpu.memory_space<vmem>>, vector<1x8x8xf32>
    %106 = vector.shape_cast %105 : vector<1x8x8xf32> to vector<8x8xf32>
    %cst_57 = arith.constant dense<0.000000e+00> : vector<8x128xf32>
    %107 = tpu.matmul %106, %83, %cst_57 {dimension_numbers = #tpu.dot_dimension_numbers<[1], [0], [0], [1], [0, 0, 1, 1], [], []>} : vector<8x8xf32>, vector<8x128xf32>, vector<8x128xf32> -> vector<8x128xf32>
    %108 = arith.addf %104, %107 : vector<8x128xf32>
    %c0_58 = arith.constant 0 : index
    %c0_59 = arith.constant 0 : index
    %109 = vector.load %arg8[%c0_58, %c0_59] : memref<8x1xf32, #tpu.memory_space<vmem>>, vector<8x1xf32>
    %110 = vector.broadcast %109 : vector<8x1xf32> to vector<8x128xf32>
    %111 = arith.addf %108, %110 : vector<8x128xf32>
    %cst_60 = arith.constant 0.000000e+00 : f32
    %112 = vector.broadcast %cst_60 : f32 to vector<8x128xf32>
    %113 = arith.maximumf %111, %112 : vector<8x128xf32>
    %c4_i32_61 = arith.constant 4 : i32
    %114 = tpu.dynamic_rotate %113 by %c4_i32_61 dim 1 : vector<8x128xf32>, i32 -> vector<8x128xf32>
    %c4_i32_62 = arith.constant 4 : i32
    %115 = vector.broadcast %c4_i32_62 : i32 to vector<1x128xi32>
    %116 = arith.cmpi sge, %16, %115 : vector<1x128xi32>
    %117 = arith.extui %116 : vector<1x128xi1> to vector<1x128xi32>
    %118 = arith.sitofp %117 : vector<1x128xi32> to vector<1x128xf32>
    %119 = vector.broadcast %118 : vector<1x128xf32> to vector<8x128xf32>
    %120 = arith.mulf %114, %119 : vector<8x128xf32>
    %c0_63 = arith.constant 0 : index
    %c0_64 = arith.constant 0 : index
    %c0_65 = arith.constant 0 : index
    %121 = vector.load %arg9[%c0_63, %c0_64, %c0_65] : memref<3x8x8xf32, #tpu.memory_space<vmem>>, vector<1x8x8xf32>
    %122 = vector.shape_cast %121 : vector<1x8x8xf32> to vector<8x8xf32>
    %cst_66 = arith.constant dense<0.000000e+00> : vector<8x128xf32>
    %123 = tpu.matmul %122, %120, %cst_66 {dimension_numbers = #tpu.dot_dimension_numbers<[1], [0], [0], [1], [0, 0, 1, 1], [], []>} : vector<8x8xf32>, vector<8x128xf32>, vector<8x128xf32> -> vector<8x128xf32>
    %c2_i32_67 = arith.constant 2 : i32
    %124 = tpu.dynamic_rotate %113 by %c2_i32_67 dim 1 : vector<8x128xf32>, i32 -> vector<8x128xf32>
    %c2_i32_68 = arith.constant 2 : i32
    %125 = vector.broadcast %c2_i32_68 : i32 to vector<1x128xi32>
    %126 = arith.cmpi sge, %16, %125 : vector<1x128xi32>
    %127 = arith.extui %126 : vector<1x128xi1> to vector<1x128xi32>
    %128 = arith.sitofp %127 : vector<1x128xi32> to vector<1x128xf32>
    %129 = vector.broadcast %128 : vector<1x128xf32> to vector<8x128xf32>
    %130 = arith.mulf %124, %129 : vector<8x128xf32>
    %c1_69 = arith.constant 1 : index
    %c0_70 = arith.constant 0 : index
    %c0_71 = arith.constant 0 : index
    %131 = vector.load %arg9[%c1_69, %c0_70, %c0_71] : memref<3x8x8xf32, #tpu.memory_space<vmem>>, vector<1x8x8xf32>
    %132 = vector.shape_cast %131 : vector<1x8x8xf32> to vector<8x8xf32>
    %cst_72 = arith.constant dense<0.000000e+00> : vector<8x128xf32>
    %133 = tpu.matmul %132, %130, %cst_72 {dimension_numbers = #tpu.dot_dimension_numbers<[1], [0], [0], [1], [0, 0, 1, 1], [], []>} : vector<8x8xf32>, vector<8x128xf32>, vector<8x128xf32> -> vector<8x128xf32>
    %134 = arith.addf %123, %133 : vector<8x128xf32>
    %c2_73 = arith.constant 2 : index
    %c0_74 = arith.constant 0 : index
    %c0_75 = arith.constant 0 : index
    %135 = vector.load %arg9[%c2_73, %c0_74, %c0_75] : memref<3x8x8xf32, #tpu.memory_space<vmem>>, vector<1x8x8xf32>
    %136 = vector.shape_cast %135 : vector<1x8x8xf32> to vector<8x8xf32>
    %cst_76 = arith.constant dense<0.000000e+00> : vector<8x128xf32>
    %137 = tpu.matmul %136, %113, %cst_76 {dimension_numbers = #tpu.dot_dimension_numbers<[1], [0], [0], [1], [0, 0, 1, 1], [], []>} : vector<8x8xf32>, vector<8x128xf32>, vector<8x128xf32> -> vector<8x128xf32>
    %138 = arith.addf %134, %137 : vector<8x128xf32>
    %c0_77 = arith.constant 0 : index
    %c0_78 = arith.constant 0 : index
    %139 = vector.load %arg10[%c0_77, %c0_78] : memref<8x1xf32, #tpu.memory_space<vmem>>, vector<8x1xf32>
    %140 = vector.broadcast %139 : vector<8x1xf32> to vector<8x128xf32>
    %141 = arith.addf %138, %140 : vector<8x128xf32>
    %cst_79 = arith.constant 0.000000e+00 : f32
    %142 = vector.broadcast %cst_79 : f32 to vector<8x128xf32>
    %143 = arith.maximumf %141, %142 : vector<8x128xf32>
    %144 = arith.addf %143, %83 : vector<8x128xf32>
    %c0_80 = arith.constant 0 : index
    %c0_81 = arith.constant 0 : index
    %145 = vector.load %arg11[%c0_80, %c0_81] : memref<1x8xf32, #tpu.memory_space<vmem>>, vector<1x8xf32>
    %cst_82 = arith.constant dense<0.000000e+00> : vector<1x128xf32>
    %146 = tpu.matmul %145, %144, %cst_82 {dimension_numbers = #tpu.dot_dimension_numbers<[1], [0], [0], [1], [0, 0, 1, 1], [], []>} : vector<1x8xf32>, vector<8x128xf32>, vector<1x128xf32> -> vector<1x128xf32>
    %c0_83 = arith.constant 0 : index
    %c0_84 = arith.constant 0 : index
    %147 = vector.load %arg12[%c0_83, %c0_84] : memref<1x1xf32, #tpu.memory_space<vmem>>, vector<1x1xf32>
    %148 = vector.broadcast %147 : vector<1x1xf32> to vector<1x128xf32>
    %149 = arith.addf %146, %148 : vector<1x128xf32>
    %c0_85 = arith.constant 0 : index
    %c0_86 = arith.constant 0 : index
    %150 = vector.load %arg13[%c0_85, %c0_86] : memref<1x128xf32, #tpu.memory_space<vmem>>, vector<1x128xf32>
    tpu.vector_store %arg13[%c0_85, %c0_86], %149 {strides = array<i32>} : memref<1x128xf32, #tpu.memory_space<vmem>>, vector<1x128xf32>,
    return
  }
}

</mosaic_0001>

<llo_original>
// kernel: tpu_custom_call.1
$region0: #{tpu_custom_call.1}
  #allocation0 [shape = 'u32[]', space=smem, size = 0x4, offset = 0x4, fixed_abs, tag = 'smem constant byte address 0x4 - core index']
  #allocation1 [shape = 'u32[144,128]{1,0:T(1,128)}', space=vmem, size = 0x12000, scoped, tag = 'internal scratch']
  #allocation2 [shape = 'f32[1,1]{1,0:T(1,128)S(1)}', space=vmem, size = 0x200, scoped, tag = 'scoped memory for tpu_custom_call.1']
  %s0 = inlined_call_operand.vmem [shape: f32[4,128], index: 0, kind: input, shape index: {}]
  %s1 = inlined_call_operand.vmem [shape: f32[3,8,4], index: 1, kind: input, shape index: {}]
  %s2 = inlined_call_operand.vmem [shape: f32[8,1], index: 2, kind: input, shape index: {}]
  %s3 = inlined_call_operand.vmem [shape: f32[3,8,8], index: 3, kind: input, shape index: {}]
  %s4 = inlined_call_operand.vmem [shape: f32[8,1], index: 4, kind: input, shape index: {}]
  %s5 = inlined_call_operand.vmem [shape: f32[8,4], index: 5, kind: input, shape index: {}]
  %s6 = inlined_call_operand.vmem [shape: f32[8,1], index: 6, kind: input, shape index: {}]
  %s7 = inlined_call_operand.vmem [shape: f32[3,8,8], index: 7, kind: input, shape index: {}]
  %s8 = inlined_call_operand.vmem [shape: f32[8,1], index: 8, kind: input, shape index: {}]
  %s9 = inlined_call_operand.vmem [shape: f32[3,8,8], index: 9, kind: input, shape index: {}]
  %s10 = inlined_call_operand.vmem [shape: f32[8,1], index: 10, kind: input, shape index: {}]
  %s11 = inlined_call_operand.vmem [shape: f32[1,8], index: 11, kind: input, shape index: {}]
  %s12 = inlined_call_operand.<no memory space> [shape: f32[1,1], index: 12, kind: input, shape index: {}]
  %s13 = inlined_call_operand.hbm [shape: f32[1,128], index: 13, kind: output, shape index: {}]
  %s14 = sld [smem:[#allocation0]]
  $region62: #{tpu_custom_call.1} parent=0
    _
  %s16 = ssub.s32 1, %s14
  %s17 = scalar_select 0, %s16, %s14
  %v18 = vstv %s12
  %19 = vst [vmem:[#allocation2] sm:$0x1] %v18
  $region1: #{tpu_custom_call.1} parent=0
    #allocation3 [shape = 'u8[512]{0}', space=vmem, size = 0x400, scoped, tag = 'output window, operand 0, single buffered']
    #allocation4 [shape = 's32[1]{0}', space=sflag, size = 0x4, scoped, tag = 'scoped memory for tpu_custom_call.1']
    %20 = vsyncpa [#allocation4], 0
    // Predicated region
    $region2: #{tpu_custom_call.1} parent=1 // pred_check
      _
    $region3: #{tpu_custom_call.1} parent=1 // pred_check_branch
      %22 = sbr.rel (0) target = $region5
    $region4: #{tpu_custom_call.1} parent=1 // pred_region
      _
    $region5: #{tpu_custom_call.1} parent=1 // pred_fallthru
      _
    // Predicated region
    $region6: #{tpu_custom_call.1} parent=1 // pred_check
      _
    $region7: #{tpu_custom_call.1} parent=1 // pred_check_branch
      %24 = sbr.rel (0) target = $region9
    $region8: #{tpu_custom_call.1} parent=1 // pred_region
      _
    $region9: #{tpu_custom_call.1} parent=1 // pred_fallthru
      _
    // Predicated region
    $region10: #{tpu_custom_call.1} parent=1 // pred_check
      _
    $region11: #{tpu_custom_call.1} parent=1 // pred_check_branch
      %26 = sbr.rel (0) target = $region13
    $region12: #{tpu_custom_call.1} parent=1 // pred_region
      _
    $region13: #{tpu_custom_call.1} parent=1 // pred_fallthru
      _
    // Predicated region
    $region14: #{tpu_custom_call.1} parent=1 // pred_check
      _
    $region15: #{tpu_custom_call.1} parent=1 // pred_check_branch
      %28 = sbr.rel (0) target = $region17
    $region16: #{tpu_custom_call.1} parent=1 // pred_region
      _
    $region17: #{tpu_custom_call.1} parent=1 // pred_fallthru
      _
    // Predicated region
    $region18: #{tpu_custom_call.1} parent=1 // pred_check
      _
    $region19: #{tpu_custom_call.1} parent=1 // pred_check_branch
      %30 = sbr.rel (0) target = $region21
    $region20: #{tpu_custom_call.1} parent=1 // pred_region
      _
    $region21: #{tpu_custom_call.1} parent=1 // pred_fallthru
      _
    // Predicated region
    $region22: #{tpu_custom_call.1} parent=1 // pred_check
      _
    $region23: #{tpu_custom_call.1} parent=1 // pred_check_branch
      %32 = sbr.rel (0) target = $region25
    $region24: #{tpu_custom_call.1} parent=1 // pred_region
      _
    $region25: #{tpu_custom_call.1} parent=1 // pred_fallthru
      _
    // Predicated region
    $region26: #{tpu_custom_call.1} parent=1 // pred_check
      _
    $region27: #{tpu_custom_call.1} parent=1 // pred_check_branch
      %34 = sbr.rel (0) target = $region29
    $region28: #{tpu_custom_call.1} parent=1 // pred_region
      _
    $region29: #{tpu_custom_call.1} parent=1 // pred_fallthru
      _
    // Predicated region
    $region30: #{tpu_custom_call.1} parent=1 // pred_check
      _
    $region31: #{tpu_custom_call.1} parent=1 // pred_check_branch
      %36 = sbr.rel (0) target = $region33
    $region32: #{tpu_custom_call.1} parent=1 // pred_region
      _
    $region33: #{tpu_custom_call.1} parent=1 // pred_fallthru
      _
    // Predicated region
    $region34: #{tpu_custom_call.1} parent=1 // pred_check
      _
    $region35: #{tpu_custom_call.1} parent=1 // pred_check_branch
      %38 = sbr.rel (0) target = $region37
    $region36: #{tpu_custom_call.1} parent=1 // pred_region
      _
    $region37: #{tpu_custom_call.1} parent=1 // pred_fallthru
      _
    // Predicated region
    $region38: #{tpu_custom_call.1} parent=1 // pred_check
      _
    $region39: #{tpu_custom_call.1} parent=1 // pred_check_branch
      %40 = sbr.rel (0) target = $region41
    $region40: #{tpu_custom_call.1} parent=1 // pred_region
      _
    $region41: #{tpu_custom_call.1} parent=1 // pred_fallthru
      _
    // Predicated region
    $region42: #{tpu_custom_call.1} parent=1 // pred_check
      _
    $region43: #{tpu_custom_call.1} parent=1 // pred_check_branch
      %42 = sbr.rel (0) target = $region45
    $region44: #{tpu_custom_call.1} parent=1 // pred_region
      _
    $region45: #{tpu_custom_call.1} parent=1 // pred_fallthru
      _
    // Predicated region
    $region46: #{tpu_custom_call.1} parent=1 // pred_check
      _
    $region47: #{tpu_custom_call.1} parent=1 // pred_check_branch
      %44 = sbr.rel (0) target = $region49
    $region48: #{tpu_custom_call.1} parent=1 // pred_region
      _
    $region49: #{tpu_custom_call.1} parent=1 // pred_fallthru
      _
    // Predicated region
    $region50: #{tpu_custom_call.1} parent=1 // pred_check
      _
    $region51: #{tpu_custom_call.1} parent=1 // pred_check_branch
      %46 = sbr.rel (0) target = $region53
    $region52: #{tpu_custom_call.1} parent=1 // pred_region
      _
    $region53: #{tpu_custom_call.1} parent=1 // pred_fallthru
      _
    %v47 = vlaneseq
    %v48 = vand.u32 %v47, 127
    %vm49 = vcmp.lt.s32.totalorder %v48, 0
    %v50 = vsub.s32 0, %v48
    %v51 = vsel %vm49, %v50, %v48
    %v52 = vshrl.u32 %v51, 4
    %v53 = vand.u32 %v51, 15
    %v54 = vsub.s32 0, %v53
    %v55 = vsel %vm49, %v54, %v53
    %vm56 = vcmp.ne.s32.totalorder %v55, 0
    %vm57 = vcmp.lt.s32.totalorder %v55, 0
    %vm58 = vmand %vm57, %vm56
    %v59 = vadd.s32 %v55, 16
    %v60 = vsel %vm58, %v59, %v55
    %v61 = vld [vmem:[%s0] sm:$0xf]
    %62 = vrot.lane.b32.xlu0 %v61, 2
    %v63 = vpop.permute.xlu0 %62
    %vm64 = vcmp.ge.s32.totalorder %v60, 2
    %v65 = vsel %vm64, 1, 0
    %v66 = vcvt.s32.f32 %v65
    %v67 = vmul.f32 %v63, %v66
    %v68 = vld [vmem:[%s1] sm:$0xff]
    %69 = vrot.lane.b32.xlu0 %v61, 1
    %v70 = vpop.permute.xlu0 %69
    %vm71 = vcmp.ge.s32.totalorder %v60, 1
    %v72 = vsel %vm71, 1, 0
    %v73 = vcvt.s32.f32 %v72
    %v74 = vmul.f32 %v70, %v73
    %s75 = scalar_lea.vmem %s1, 8
    %v76 = vld [vmem:[%s75] sm:$0xff]
    %vm77 = vcmask 31744
    %v79 = vsel %vm77, %v76, 0
    %vm81 = vcmask 1043456
    %v83 = vsel %vm81, %v74, 0
    %85 = vmatprep.subr.mxu0 0.0
    %86 = vmatpush1.msra.mxu0 %v83
    %87 = vmatprep.subr.mxu0 0.0
    %88 = vmatpush1.msra.mxu0 0.0
    %89 = vmatprep.subr.mxu0 0.0
    %90 = vmatpush1.msra.mxu0 0.0
    %91 = vmatprep.subr.mxu0 0.0
    %92 = vmatpush1.msra.mxu0 0.0
    %93 = vmatprep.subr.mxu0 0.0
    %94 = vmatpush1.msra.mxu0 0.0
    %95 = vmatprep.subr.mxu0 0.0
    %96 = vmatpush1.msra.mxu0 0.0
    %97 = vmatprep.subr.mxu0 0.0
    %98 = vmatpush1.msra.mxu0 0.0
    %99 = vmatprep.subr.mxu0 0.0
    %100 = vmatpush1.msra.mxu0 0.0
    %101 = vmatprep.subr.mxu0 0.0
    %102 = vmatpush1.msra.mxu0 0.0
    %103 = vmatprep.subr.mxu0 0.0
    %104 = vmatpush1.msra.mxu0 0.0
    %105 = vmatprep.subr.mxu0 0.0
    %106 = vmatpush1.msra.mxu0 0.0
    %107 = vmatprep.subr.mxu0 0.0
    %108 = vmatpush1.msra.mxu0 0.0
    %109 = vmatprep.subr.mxu0 0.0
    %110 = vmatpush1.msra.mxu0 0.0
    %111 = vmatprep.subr.mxu0 0.0
    %112 = vmatpush1.msra.mxu0 0.0
    %113 = vmatprep.subr.mxu0 0.0
    %114 = vmatpush1.msra.mxu0 0.0
    %115 = vmatprep.subr.mxu0 0.0
    %116 = vmatpush1.msra.mxu0 0.0
    %117 = vmatprep.subr.mxu0 0.0
    %118 = vmatpush1.msra.mxu0 0.0
    %119 = vmatprep.subr.mxu0 0.0
    %120 = vmatpush1.msra.mxu0 0.0
    %121 = vmatprep.subr.mxu0 0.0
    %122 = vmatpush1.msra.mxu0 0.0
    %123 = vmatprep.subr.mxu0 0.0
    %124 = vmatpush1.msra.mxu0 0.0
    %125 = vmatprep.subr.mxu0 0.0
    %126 = vmatpush1.msra.mxu0 0.0
    %127 = vmatprep.subr.mxu0 0.0
    %128 = vmatpush1.msra.mxu0 0.0
    %129 = vmatprep.subr.mxu0 0.0
    %130 = vmatpush1.msra.mxu0 0.0
    %131 = vmatprep.subr.mxu0 0.0
    %132 = vmatpush1.msra.mxu0 0.0
    %133 = vmatprep.subr.mxu0 0.0
    %134 = vmatpush1.msra.mxu0 0.0
    %135 = vmatprep.subr.mxu0 0.0
    %136 = vmatpush1.msra.mxu0 0.0
    %137 = vmatprep.subr.mxu0 0.0
    %138 = vmatpush1.msra.mxu0 0.0
    %139 = vmatprep.subr.mxu0 0.0
    %140 = vmatpush1.msra.mxu0 0.0
    %141 = vmatprep.subr.mxu0 0.0
    %142 = vmatpush1.msra.mxu0 0.0
    %143 = vmatprep.subr.mxu0 0.0
    %144 = vmatpush1.msra.mxu0 0.0
    %145 = vmatprep.subr.mxu0 0.0
    %146 = vmatpush1.msra.mxu0 0.0
    %147 = vmatprep.subr.mxu0 0.0
    %148 = vmatpush1.msra.mxu0 0.0
    %149 = vmatprep.mubr.f32.mxu0 0.0
    %150 = vmatmul.mubr.f32.gmra.mrb[0].mxu0 %v79
    %v151 = vpop.f32.mrb[0].mxu0
    %v152 = vadd.f32 0.0, %v151
    %v153 = vpop.f32.mrb[0].mxu0
    %154 = vdwg.mxu0
    %v156 = vsel %vm77, %v68, 0
    %v159 = vsel %vm81, %v67, 0
    %161 = vmatprep.subr.mxu0 0.0
    %162 = vmatpush1.msra.mxu0 %v159
    %163 = vmatprep.subr.mxu0 0.0
    %164 = vmatpush1.msra.mxu0 0.0
    %165 = vmatprep.subr.mxu0 0.0
    %166 = vmatpush1.msra.mxu0 0.0
    %167 = vmatprep.subr.mxu0 0.0
    %168 = vmatpush1.msra.mxu0 0.0
    %169 = vmatprep.subr.mxu0 0.0
    %170 = vmatpush1.msra.mxu0 0.0
    %171 = vmatprep.subr.mxu0 0.0
    %172 = vmatpush1.msra.mxu0 0.0
    %173 = vmatprep.subr.mxu0 0.0
    %174 = vmatpush1.msra.mxu0 0.0
    %175 = vmatprep.subr.mxu0 0.0
    %176 = vmatpush1.msra.mxu0 0.0
    %177 = vmatprep.subr.mxu0 0.0
    %178 = vmatpush1.msra.mxu0 0.0
    %179 = vmatprep.subr.mxu0 0.0
    %180 = vmatpush1.msra.mxu0 0.0
    %181 = vmatprep.subr.mxu0 0.0
    %182 = vmatpush1.msra.mxu0 0.0
    %183 = vmatprep.subr.mxu0 0.0
    %184 = vmatpush1.msra.mxu0 0.0
    %185 = vmatprep.subr.mxu0 0.0
    %186 = vmatpush1.msra.mxu0 0.0
    %187 = vmatprep.subr.mxu0 0.0
    %188 = vmatpush1.msra.mxu0 0.0
    %189 = vmatprep.subr.mxu0 0.0
    %190 = vmatpush1.msra.mxu0 0.0
    %191 = vmatprep.subr.mxu0 0.0
    %192 = vmatpush1.msra.mxu0 0.0
    %193 = vmatprep.subr.mxu0 0.0
    %194 = vmatpush1.msra.mxu0 0.0
    %195 = vmatprep.subr.mxu0 0.0
    %196 = vmatpush1.msra.mxu0 0.0
    %197 = vmatprep.subr.mxu0 0.0
    %198 = vmatpush1.msra.mxu0 0.0
    %199 = vmatprep.subr.mxu0 0.0
    %200 = vmatpush1.msra.mxu0 0.0
    %201 = vmatprep.subr.mxu0 0.0
    %202 = vmatpush1.msra.mxu0 0.0
    %203 = vmatprep.subr.mxu0 0.0
    %204 = vmatpush1.msra.mxu0 0.0
    %205 = vmatprep.subr.mxu0 0.0
    %206 = vmatpush1.msra.mxu0 0.0
    %207 = vmatprep.subr.mxu0 0.0
    %208 = vmatpush1.msra.mxu0 0.0
    %209 = vmatprep.subr.mxu0 0.0
    %210 = vmatpush1.msra.mxu0 0.0
    %211 = vmatprep.subr.mxu0 0.0
    %212 = vmatpush1.msra.mxu0 0.0
    %213 = vmatprep.subr.mxu0 0.0
    %214 = vmatpush1.msra.mxu0 0.0
    %215 = vmatprep.subr.mxu0 0.0
    %216 = vmatpush1.msra.mxu0 0.0
    %217 = vmatprep.subr.mxu0 0.0
    %218 = vmatpush1.msra.mxu0 0.0
    %219 = vmatprep.subr.mxu0 0.0
    %220 = vmatpush1.msra.mxu0 0.0
    %221 = vmatprep.subr.mxu0 0.0
    %222 = vmatpush1.msra.mxu0 0.0
    %223 = vmatprep.subr.mxu0 0.0
    %224 = vmatpush1.msra.mxu0 0.0
    %225 = vmatprep.mubr.f32.mxu0 0.0
    %226 = vmatmul.mubr.f32.gmra.mrb[0].mxu0 %v156
    %v227 = vpop.f32.mrb[0].mxu0
    %v228 = vadd.f32 %v152, %v227
    %v229 = vpop.f32.mrb[0].mxu0
    %230 = vdwg.mxu0
    %s231 = scalar_lea.vmem %s1, 16
    %v232 = vld [vmem:[%s231] sm:$0xff]
    %v234 = vsel %vm77, %v232, 0
    %v237 = vsel %vm81, %v61, 0
    %239 = vmatprep.subr.mxu0 0.0
    %240 = vmatpush1.msra.mxu0 %v237
    %241 = vmatprep.subr.mxu0 0.0
    %242 = vmatpush1.msra.mxu0 0.0
    %243 = vmatprep.subr.mxu0 0.0
    %244 = vmatpush1.msra.mxu0 0.0
    %245 = vmatprep.subr.mxu0 0.0
    %246 = vmatpush1.msra.mxu0 0.0
    %247 = vmatprep.subr.mxu0 0.0
    %248 = vmatpush1.msra.mxu0 0.0
    %249 = vmatprep.subr.mxu0 0.0
    %250 = vmatpush1.msra.mxu0 0.0
    %251 = vmatprep.subr.mxu0 0.0
    %252 = vmatpush1.msra.mxu0 0.0
    %253 = vmatprep.subr.mxu0 0.0
    %254 = vmatpush1.msra.mxu0 0.0
    %255 = vmatprep.subr.mxu0 0.0
    %256 = vmatpush1.msra.mxu0 0.0
    %257 = vmatprep.subr.mxu0 0.0
    %258 = vmatpush1.msra.mxu0 0.0
    %259 = vmatprep.subr.mxu0 0.0
    %260 = vmatpush1.msra.mxu0 0.0
    %261 = vmatprep.subr.mxu0 0.0
    %262 = vmatpush1.msra.mxu0 0.0
    %263 = vmatprep.subr.mxu0 0.0
    %264 = vmatpush1.msra.mxu0 0.0
    %265 = vmatprep.subr.mxu0 0.0
    %266 = vmatpush1.msra.mxu0 0.0
    %267 = vmatprep.subr.mxu0 0.0
    %268 = vmatpush1.msra.mxu0 0.0
    %269 = vmatprep.subr.mxu0 0.0
    %270 = vmatpush1.msra.mxu0 0.0
    %271 = vmatprep.subr.mxu0 0.0
    %272 = vmatpush1.msra.mxu0 0.0
    %273 = vmatprep.subr.mxu0 0.0
    %274 = vmatpush1.msra.mxu0 0.0
    %275 = vmatprep.subr.mxu0 0.0
    %276 = vmatpush1.msra.mxu0 0.0
    %277 = vmatprep.subr.mxu0 0.0
    %278 = vmatpush1.msra.mxu0 0.0
    %279 = vmatprep.subr.mxu0 0.0
    %280 = vmatpush1.msra.mxu0 0.0
    %281 = vmatprep.subr.mxu0 0.0
    %282 = vmatpush1.msra.mxu0 0.0
    %283 = vmatprep.subr.mxu0 0.0
    %284 = vmatpush1.msra.mxu0 0.0
    %285 = vmatprep.subr.mxu0 0.0
    %286 = vmatpush1.msra.mxu0 0.0
    %287 = vmatprep.subr.mxu0 0.0
    %288 = vmatpush1.msra.mxu0 0.0
    %289 = vmatprep.subr.mxu0 0.0
    %290 = vmatpush1.msra.mxu0 0.0
    %291 = vmatprep.subr.mxu0 0.0
    %292 = vmatpush1.msra.mxu0 0.0
    %293 = vmatprep.subr.mxu0 0.0
    %294 = vmatpush1.msra.mxu0 0.0
    %295 = vmatprep.subr.mxu0 0.0
    %296 = vmatpush1.msra.mxu0 0.0
    %297 = vmatprep.subr.mxu0 0.0
    %298 = vmatpush1.msra.mxu0 0.0
    %299 = vmatprep.subr.mxu0 0.0
    %300 = vmatpush1.msra.mxu0 0.0
    %301 = vmatprep.subr.mxu0 0.0
    %302 = vmatpush1.msra.mxu0 0.0
    %303 = vmatprep.mubr.f32.mxu0 0.0
    %304 = vmatmul.mubr.f32.gmra.mrb[0].mxu0 %v234
    %v305 = vpop.f32.mrb[0].mxu0
    %v306 = vadd.f32 0.0, %v305
    %v307 = vpop.f32.mrb[0].mxu0
    %308 = vdwg.mxu0
    %v309 = vadd.f32 %v228, %v306
    %v310 = vld [vmem:[%s2] sm:$0xff]
    %312 = vset.pattern.permute.xlu0 0
    %313 = vperm.xlu0 %312, %v310
    %v314 = vpop.permute.xlu0 %313
    %v316 = vadd.f32 %v309, %v314
    %v317 = vmax.f32 %v316, 0.0
    %318 = vrot.lane.b32.xlu0 %v317, 2
    %v319 = vpop.permute.xlu0 %318
    %v320 = vmul.f32 %v319, %v66
    %v321 = vld [vmem:[%s3] sm:$0xff]
    %322 = vrot.lane.b32.xlu0 %v317, 1
    %v323 = vpop.permute.xlu0 %322
    %v324 = vmul.f32 %v323, %v73
    %s325 = scalar_lea.vmem %s3, 8
    %v326 = vld [vmem:[%s325] sm:$0xff]
    %vm327 = vcmask 64512
    %v329 = vsel %vm327, %v326, 0
    %331 = vmatprep.subr.mxu0 0.0
    %332 = vmatpush1.msra.mxu0 %v324
    %333 = vmatprep.subr.mxu0 0.0
    %334 = vmatpush1.msra.mxu0 0.0
    %335 = vmatprep.subr.mxu0 0.0
    %336 = vmatpush1.msra.mxu0 0.0
    %337 = vmatprep.subr.mxu0 0.0
    %338 = vmatpush1.msra.mxu0 0.0
    %339 = vmatprep.subr.mxu0 0.0
    %340 = vmatpush1.msra.mxu0 0.0
    %341 = vmatprep.subr.mxu0 0.0
    %342 = vmatpush1.msra.mxu0 0.0
    %343 = vmatprep.subr.mxu0 0.0
    %344 = vmatpush1.msra.mxu0 0.0
    %345 = vmatprep.subr.mxu0 0.0
    %346 = vmatpush1.msra.mxu0 0.0
    %347 = vmatprep.subr.mxu0 0.0
    %348 = vmatpush1.msra.mxu0 0.0
    %349 = vmatprep.subr.mxu0 0.0
    %350 = vmatpush1.msra.mxu0 0.0
    %351 = vmatprep.subr.mxu0 0.0
    %352 = vmatpush1.msra.mxu0 0.0
    %353 = vmatprep.subr.mxu0 0.0
    %354 = vmatpush1.msra.mxu0 0.0
    %355 = vmatprep.subr.mxu0 0.0
    %356 = vmatpush1.msra.mxu0 0.0
    %357 = vmatprep.subr.mxu0 0.0
    %358 = vmatpush1.msra.mxu0 0.0
    %359 = vmatprep.subr.mxu0 0.0
    %360 = vmatpush1.msra.mxu0 0.0
    %361 = vmatprep.subr.mxu0 0.0
    %362 = vmatpush1.msra.mxu0 0.0
    %363 = vmatprep.subr.mxu0 0.0
    %364 = vmatpush1.msra.mxu0 0.0
    %365 = vmatprep.subr.mxu0 0.0
    %366 = vmatpush1.msra.mxu0 0.0
    %367 = vmatprep.subr.mxu0 0.0
    %368 = vmatpush1.msra.mxu0 0.0
    %369 = vmatprep.subr.mxu0 0.0
    %370 = vmatpush1.msra.mxu0 0.0
    %371 = vmatprep.subr.mxu0 0.0
    %372 = vmatpush1.msra.mxu0 0.0
    %373 = vmatprep.subr.mxu0 0.0
    %374 = vmatpush1.msra.mxu0 0.0
    %375 = vmatprep.subr.mxu0 0.0
    %376 = vmatpush1.msra.mxu0 0.0
    %377 = vmatprep.subr.mxu0 0.0
    %378 = vmatpush1.msra.mxu0 0.0
    %379 = vmatprep.subr.mxu0 0.0
    %380 = vmatpush1.msra.mxu0 0.0
    %381 = vmatprep.subr.mxu0 0.0
    %382 = vmatpush1.msra.mxu0 0.0
    %383 = vmatprep.subr.mxu0 0.0
    %384 = vmatpush1.msra.mxu0 0.0
    %385 = vmatprep.subr.mxu0 0.0
    %386 = vmatpush1.msra.mxu0 0.0
    %387 = vmatprep.subr.mxu0 0.0
    %388 = vmatpush1.msra.mxu0 0.0
    %389 = vmatprep.subr.mxu0 0.0
    %390 = vmatpush1.msra.mxu0 0.0
    %391 = vmatprep.subr.mxu0 0.0
    %392 = vmatpush1.msra.mxu0 0.0
    %393 = vmatprep.subr.mxu0 0.0
    %394 = vmatpush1.msra.mxu0 0.0
    %395 = vmatprep.mubr.f32.mxu0 0.0
    %396 = vmatmul.mubr.f32.gmra.mrb[0].mxu0 %v329
    %v397 = vpop.f32.mrb[0].mxu0
    %v398 = vadd.f32 0.0, %v397
    %v399 = vpop.f32.mrb[0].mxu0
    %400 = vdwg.mxu0
    %v402 = vsel %vm327, %v321, 0
    %404 = vmatprep.subr.mxu0 0.0
    %405 = vmatpush1.msra.mxu0 %v320
    %406 = vmatprep.subr.mxu0 0.0
    %407 = vmatpush1.msra.mxu0 0.0
    %408 = vmatprep.subr.mxu0 0.0
    %409 = vmatpush1.msra.mxu0 0.0
    %410 = vmatprep.subr.mxu0 0.0
    %411 = vmatpush1.msra.mxu0 0.0
    %412 = vmatprep.subr.mxu0 0.0
    %413 = vmatpush1.msra.mxu0 0.0
    %414 = vmatprep.subr.mxu0 0.0
    %415 = vmatpush1.msra.mxu0 0.0
    %416 = vmatprep.subr.mxu0 0.0
    %417 = vmatpush1.msra.mxu0 0.0
    %418 = vmatprep.subr.mxu0 0.0
    %419 = vmatpush1.msra.mxu0 0.0
    %420 = vmatprep.subr.mxu0 0.0
    %421 = vmatpush1.msra.mxu0 0.0
    %422 = vmatprep.subr.mxu0 0.0
    %423 = vmatpush1.msra.mxu0 0.0
    %424 = vmatprep.subr.mxu0 0.0
    %425 = vmatpush1.msra.mxu0 0.0
    %426 = vmatprep.subr.mxu0 0.0
    %427 = vmatpush1.msra.mxu0 0.0
    %428 = vmatprep.subr.mxu0 0.0
    %429 = vmatpush1.msra.mxu0 0.0
    %430 = vmatprep.subr.mxu0 0.0
    %431 = vmatpush1.msra.mxu0 0.0
    %432 = vmatprep.subr.mxu0 0.0
    %433 = vmatpush1.msra.mxu0 0.0
    %434 = vmatprep.subr.mxu0 0.0
    %435 = vmatpush1.msra.mxu0 0.0
    %436 = vmatprep.subr.mxu0 0.0
    %437 = vmatpush1.msra.mxu0 0.0
    %438 = vmatprep.subr.mxu0 0.0
    %439 = vmatpush1.msra.mxu0 0.0
    %440 = vmatprep.subr.mxu0 0.0
    %441 = vmatpush1.msra.mxu0 0.0
    %442 = vmatprep.subr.mxu0 0.0
    %443 = vmatpush1.msra.mxu0 0.0
    %444 = vmatprep.subr.mxu0 0.0
    %445 = vmatpush1.msra.mxu0 0.0
    %446 = vmatprep.subr.mxu0 0.0
    %447 = vmatpush1.msra.mxu0 0.0
    %448 = vmatprep.subr.mxu0 0.0
    %449 = vmatpush1.msra.mxu0 0.0
    %450 = vmatprep.subr.mxu0 0.0
    %451 = vmatpush1.msra.mxu0 0.0
    %452 = vmatprep.subr.mxu0 0.0
    %453 = vmatpush1.msra.mxu0 0.0
    %454 = vmatprep.subr.mxu0 0.0
    %455 = vmatpush1.msra.mxu0 0.0
    %456 = vmatprep.subr.mxu0 0.0
    %457 = vmatpush1.msra.mxu0 0.0
    %458 = vmatprep.subr.mxu0 0.0
    %459 = vmatpush1.msra.mxu0 0.0
    %460 = vmatprep.subr.mxu0 0.0
    %461 = vmatpush1.msra.mxu0 0.0
    %462 = vmatprep.subr.mxu0 0.0
    %463 = vmatpush1.msra.mxu0 0.0
    %464 = vmatprep.subr.mxu0 0.0
    %465 = vmatpush1.msra.mxu0 0.0
    %466 = vmatprep.subr.mxu0 0.0
    %467 = vmatpush1.msra.mxu0 0.0
    %468 = vmatprep.mubr.f32.mxu0 0.0
    %469 = vmatmul.mubr.f32.gmra.mrb[0].mxu0 %v402
    %v470 = vpop.f32.mrb[0].mxu0
    %v471 = vadd.f32 %v398, %v470
    %v472 = vpop.f32.mrb[0].mxu0
    %473 = vdwg.mxu0
    %s474 = scalar_lea.vmem %s3, 16
    %v475 = vld [vmem:[%s474] sm:$0xff]
    %v477 = vsel %vm327, %v475, 0
    %479 = vmatprep.subr.mxu0 0.0
    %480 = vmatpush1.msra.mxu0 %v317
    %481 = vmatprep.subr.mxu0 0.0
    %482 = vmatpush1.msra.mxu0 0.0
    %483 = vmatprep.subr.mxu0 0.0
    %484 = vmatpush1.msra.mxu0 0.0
    %485 = vmatprep.subr.mxu0 0.0
    %486 = vmatpush1.msra.mxu0 0.0
    %487 = vmatprep.subr.mxu0 0.0
    %488 = vmatpush1.msra.mxu0 0.0
    %489 = vmatprep.subr.mxu0 0.0
    %490 = vmatpush1.msra.mxu0 0.0
    %491 = vmatprep.subr.mxu0 0.0
    %492 = vmatpush1.msra.mxu0 0.0
    %493 = vmatprep.subr.mxu0 0.0
    %494 = vmatpush1.msra.mxu0 0.0
    %495 = vmatprep.subr.mxu0 0.0
    %496 = vmatpush1.msra.mxu0 0.0
    %497 = vmatprep.subr.mxu0 0.0
    %498 = vmatpush1.msra.mxu0 0.0
    %499 = vmatprep.subr.mxu0 0.0
    %500 = vmatpush1.msra.mxu0 0.0
    %501 = vmatprep.subr.mxu0 0.0
    %502 = vmatpush1.msra.mxu0 0.0
    %503 = vmatprep.subr.mxu0 0.0
    %504 = vmatpush1.msra.mxu0 0.0
    %505 = vmatprep.subr.mxu0 0.0
    %506 = vmatpush1.msra.mxu0 0.0
    %507 = vmatprep.subr.mxu0 0.0
    %508 = vmatpush1.msra.mxu0 0.0
    %509 = vmatprep.subr.mxu0 0.0
    %510 = vmatpush1.msra.mxu0 0.0
    %511 = vmatprep.subr.mxu0 0.0
    %512 = vmatpush1.msra.mxu0 0.0
    %513 = vmatprep.subr.mxu0 0.0
    %514 = vmatpush1.msra.mxu0 0.0
    %515 = vmatprep.subr.mxu0 0.0
    %516 = vmatpush1.msra.mxu0 0.0
    %517 = vmatprep.subr.mxu0 0.0
    %518 = vmatpush1.msra.mxu0 0.0
    %519 = vmatprep.subr.mxu0 0.0
    %520 = vmatpush1.msra.mxu0 0.0
    %521 = vmatprep.subr.mxu0 0.0
    %522 = vmatpush1.msra.mxu0 0.0
    %523 = vmatprep.subr.mxu0 0.0
    %524 = vmatpush1.msra.mxu0 0.0
    %525 = vmatprep.subr.mxu0 0.0
    %526 = vmatpush1.msra.mxu0 0.0
    %527 = vmatprep.subr.mxu0 0.0
    %528 = vmatpush1.msra.mxu0 0.0
    %529 = vmatprep.subr.mxu0 0.0
    %530 = vmatpush1.msra.mxu0 0.0
    %531 = vmatprep.subr.mxu0 0.0
    %532 = vmatpush1.msra.mxu0 0.0
    %533 = vmatprep.subr.mxu0 0.0
    %534 = vmatpush1.msra.mxu0 0.0
    %535 = vmatprep.subr.mxu0 0.0
    %536 = vmatpush1.msra.mxu0 0.0
    %537 = vmatprep.subr.mxu0 0.0
    %538 = vmatpush1.msra.mxu0 0.0
    %539 = vmatprep.subr.mxu0 0.0
    %540 = vmatpush1.msra.mxu0 0.0
    %541 = vmatprep.subr.mxu0 0.0
    %542 = vmatpush1.msra.mxu0 0.0
    %543 = vmatprep.mubr.f32.mxu0 0.0
    %544 = vmatmul.mubr.f32.gmra.mrb[0].mxu0 %v477
    %v545 = vpop.f32.mrb[0].mxu0
    %v546 = vadd.f32 0.0, %v545
    %v547 = vpop.f32.mrb[0].mxu0
    %548 = vdwg.mxu0
    %v549 = vadd.f32 %v471, %v546
    %v550 = vld [vmem:[%s4] sm:$0xff]
    %552 = vset.pattern.permute.xlu0 0
    %553 = vperm.xlu0 %552, %v550
    %v554 = vpop.permute.xlu0 %553
    %v556 = vadd.f32 %v549, %v554
    %v557 = vmax.f32 %v556, 0.0
    %v558 = vld [vmem:[%s5] sm:$0xff]
    %v559 = vld [vmem:[%s6] sm:$0xff]
    %561 = vset.pattern.permute.xlu0 0
    %562 = vperm.xlu0 %561, %v559
    %v563 = vpop.permute.xlu0 %562
    %v566 = vsel %vm77, %v558, 0
    %568 = vmatprep.subr.mxu0 0.0
    %569 = vmatpush1.msra.mxu0 %v237
    %570 = vmatprep.subr.mxu0 0.0
    %571 = vmatpush1.msra.mxu0 0.0
    %572 = vmatprep.subr.mxu0 0.0
    %573 = vmatpush1.msra.mxu0 0.0
    %574 = vmatprep.subr.mxu0 0.0
    %575 = vmatpush1.msra.mxu0 0.0
    %576 = vmatprep.subr.mxu0 0.0
    %577 = vmatpush1.msra.mxu0 0.0
    %578 = vmatprep.subr.mxu0 0.0
    %579 = vmatpush1.msra.mxu0 0.0
    %580 = vmatprep.subr.mxu0 0.0
    %581 = vmatpush1.msra.mxu0 0.0
    %582 = vmatprep.subr.mxu0 0.0
    %583 = vmatpush1.msra.mxu0 0.0
    %584 = vmatprep.subr.mxu0 0.0
    %585 = vmatpush1.msra.mxu0 0.0
    %586 = vmatprep.subr.mxu0 0.0
    %587 = vmatpush1.msra.mxu0 0.0
    %588 = vmatprep.subr.mxu0 0.0
    %589 = vmatpush1.msra.mxu0 0.0
    %590 = vmatprep.subr.mxu0 0.0
    %591 = vmatpush1.msra.mxu0 0.0
    %592 = vmatprep.subr.mxu0 0.0
    %593 = vmatpush1.msra.mxu0 0.0
    %594 = vmatprep.subr.mxu0 0.0
    %595 = vmatpush1.msra.mxu0 0.0
    %596 = vmatprep.subr.mxu0 0.0
    %597 = vmatpush1.msra.mxu0 0.0
    %598 = vmatprep.subr.mxu0 0.0
    %599 = vmatpush1.msra.mxu0 0.0
    %600 = vmatprep.subr.mxu0 0.0
    %601 = vmatpush1.msra.mxu0 0.0
    %602 = vmatprep.subr.mxu0 0.0
    %603 = vmatpush1.msra.mxu0 0.0
    %604 = vmatprep.subr.mxu0 0.0
    %605 = vmatpush1.msra.mxu0 0.0
    %606 = vmatprep.subr.mxu0 0.0
    %607 = vmatpush1.msra.mxu0 0.0
    %608 = vmatprep.subr.mxu0 0.0
    %609 = vmatpush1.msra.mxu0 0.0
    %610 = vmatprep.subr.mxu0 0.0
    %611 = vmatpush1.msra.mxu0 0.0
    %612 = vmatprep.subr.mxu0 0.0
    %613 = vmatpush1.msra.mxu0 0.0
    %614 = vmatprep.subr.mxu0 0.0
    %615 = vmatpush1.msra.mxu0 0.0
    %616 = vmatprep.subr.mxu0 0.0
    %617 = vmatpush1.msra.mxu0 0.0
    %618 = vmatprep.subr.mxu0 0.0
    %619 = vmatpush1.msra.mxu0 0.0
    %620 = vmatprep.subr.mxu0 0.0
    %621 = vmatpush1.msra.mxu0 0.0
    %622 = vmatprep.subr.mxu0 0.0
    %623 = vmatpush1.msra.mxu0 0.0
    %624 = vmatprep.subr.mxu0 0.0
    %625 = vmatpush1.msra.mxu0 0.0
    %626 = vmatprep.subr.mxu0 0.0
    %627 = vmatpush1.msra.mxu0 0.0
    %628 = vmatprep.subr.mxu0 0.0
    %629 = vmatpush1.msra.mxu0 0.0
    %630 = vmatprep.subr.mxu0 0.0
    %631 = vmatpush1.msra.mxu0 0.0
    %632 = vmatprep.mubr.f32.mxu0 0.0
    %633 = vmatmul.mubr.f32.gmra.mrb[0].mxu0 %v566
    %v634 = vpop.f32.mrb[0].mxu0
    %v635 = vadd.f32 %v563, %v634
    %v636 = vpop.f32.mrb[0].mxu0
    %637 = vdwg.mxu0
    %v638 = vadd.f32 %v557, %v635
    %639 = vrot.lane.b32.xlu0 %v638, 4
    %v640 = vpop.permute.xlu0 %639
    %vm641 = vcmp.ge.s32.totalorder %v60, 4
    %v642 = vsel %vm641, 1, 0
    %v643 = vcvt.s32.f32 %v642
    %v644 = vmul.f32 %v640, %v643
    %v645 = vld [vmem:[%s7] sm:$0xff]
    %646 = vrot.lane.b32.xlu0 %v638, 2
    %v647 = vpop.permute.xlu0 %646
    %v648 = vmul.f32 %v647, %v66
    %s649 = scalar_lea.vmem %s7, 8
    %v650 = vld [vmem:[%s649] sm:$0xff]
    %v652 = vsel %vm327, %v650, 0
    %654 = vmatprep.subr.mxu0 0.0
    %655 = vmatpush1.msra.mxu0 %v648
    %656 = vmatprep.subr.mxu0 0.0
    %657 = vmatpush1.msra.mxu0 0.0
    %658 = vmatprep.subr.mxu0 0.0
    %659 = vmatpush1.msra.mxu0 0.0
    %660 = vmatprep.subr.mxu0 0.0
    %661 = vmatpush1.msra.mxu0 0.0
    %662 = vmatprep.subr.mxu0 0.0
    %663 = vmatpush1.msra.mxu0 0.0
    %664 = vmatprep.subr.mxu0 0.0
    %665 = vmatpush1.msra.mxu0 0.0
    %666 = vmatprep.subr.mxu0 0.0
    %667 = vmatpush1.msra.mxu0 0.0
    %668 = vmatprep.subr.mxu0 0.0
    %669 = vmatpush1.msra.mxu0 0.0
    %670 = vmatprep.subr.mxu0 0.0
    %671 = vmatpush1.msra.mxu0 0.0
    %672 = vmatprep.subr.mxu0 0.0
    %673 = vmatpush1.msra.mxu0 0.0
    %674 = vmatprep.subr.mxu0 0.0
    %675 = vmatpush1.msra.mxu0 0.0
    %676 = vmatprep.subr.mxu0 0.0
    %677 = vmatpush1.msra.mxu0 0.0
    %678 = vmatprep.subr.mxu0 0.0
    %679 = vmatpush1.msra.mxu0 0.0
    %680 = vmatprep.subr.mxu0 0.0
    %681 = vmatpush1.msra.mxu0 0.0
    %682 = vmatprep.subr.mxu0 0.0
    %683 = vmatpush1.msra.mxu0 0.0
    %684 = vmatprep.subr.mxu0 0.0
    %685 = vmatpush1.msra.mxu0 0.0
    %686 = vmatprep.subr.mxu0 0.0
    %687 = vmatpush1.msra.mxu0 0.0
    %688 = vmatprep.subr.mxu0 0.0
    %689 = vmatpush1.msra.mxu0 0.0
    %690 = vmatprep.subr.mxu0 0.0
    %691 = vmatpush1.msra.mxu0 0.0
    %692 = vmatprep.subr.mxu0 0.0
    %693 = vmatpush1.msra.mxu0 0.0
    %694 = vmatprep.subr.mxu0 0.0
    %695 = vmatpush1.msra.mxu0 0.0
    %696 = vmatprep.subr.mxu0 0.0
    %697 = vmatpush1.msra.mxu0 0.0
    %698 = vmatprep.subr.mxu0 0.0
    %699 = vmatpush1.msra.mxu0 0.0
    %700 = vmatprep.subr.mxu0 0.0
    %701 = vmatpush1.msra.mxu0 0.0
    %702 = vmatprep.subr.mxu0 0.0
    %703 = vmatpush1.msra.mxu0 0.0
    %704 = vmatprep.subr.mxu0 0.0
    %705 = vmatpush1.msra.mxu0 0.0
    %706 = vmatprep.subr.mxu0 0.0
    %707 = vmatpush1.msra.mxu0 0.0
    %708 = vmatprep.subr.mxu0 0.0
    %709 = vmatpush1.msra.mxu0 0.0
    %710 = vmatprep.subr.mxu0 0.0
    %711 = vmatpush1.msra.mxu0 0.0
    %712 = vmatprep.subr.mxu0 0.0
    %713 = vmatpush1.msra.mxu0 0.0
    %714 = vmatprep.subr.mxu0 0.0
    %715 = vmatpush1.msra.mxu0 0.0
    %716 = vmatprep.subr.mxu0 0.0
    %717 = vmatpush1.msra.mxu0 0.0
    %718 = vmatprep.mubr.f32.mxu0 0.0
    %719 = vmatmul.mubr.f32.gmra.mrb[0].mxu0 %v652
    %v720 = vpop.f32.mrb[0].mxu0
    %v721 = vadd.f32 0.0, %v720
    %v722 = vpop.f32.mrb[0].mxu0
    %723 = vdwg.mxu0
    %v725 = vsel %vm327, %v645, 0
    %727 = vmatprep.subr.mxu0 0.0
    %728 = vmatpush1.msra.mxu0 %v644
    %729 = vmatprep.subr.mxu0 0.0
    %730 = vmatpush1.msra.mxu0 0.0
    %731 = vmatprep.subr.mxu0 0.0
    %732 = vmatpush1.msra.mxu0 0.0
    %733 = vmatprep.subr.mxu0 0.0
    %734 = vmatpush1.msra.mxu0 0.0
    %735 = vmatprep.subr.mxu0 0.0
    %736 = vmatpush1.msra.mxu0 0.0
    %737 = vmatprep.subr.mxu0 0.0
    %738 = vmatpush1.msra.mxu0 0.0
    %739 = vmatprep.subr.mxu0 0.0
    %740 = vmatpush1.msra.mxu0 0.0
    %741 = vmatprep.subr.mxu0 0.0
    %742 = vmatpush1.msra.mxu0 0.0
    %743 = vmatprep.subr.mxu0 0.0
    %744 = vmatpush1.msra.mxu0 0.0
    %745 = vmatprep.subr.mxu0 0.0
    %746 = vmatpush1.msra.mxu0 0.0
    %747 = vmatprep.subr.mxu0 0.0
    %748 = vmatpush1.msra.mxu0 0.0
    %749 = vmatprep.subr.mxu0 0.0
    %750 = vmatpush1.msra.mxu0 0.0
    %751 = vmatprep.subr.mxu0 0.0
    %752 = vmatpush1.msra.mxu0 0.0
    %753 = vmatprep.subr.mxu0 0.0
    %754 = vmatpush1.msra.mxu0 0.0
    %755 = vmatprep.subr.mxu0 0.0
    %756 = vmatpush1.msra.mxu0 0.0
    %757 = vmatprep.subr.mxu0 0.0
    %758 = vmatpush1.msra.mxu0 0.0
    %759 = vmatprep.subr.mxu0 0.0
    %760 = vmatpush1.msra.mxu0 0.0
    %761 = vmatprep.subr.mxu0 0.0
    %762 = vmatpush1.msra.mxu0 0.0
    %763 = vmatprep.subr.mxu0 0.0
    %764 = vmatpush1.msra.mxu0 0.0
    %765 = vmatprep.subr.mxu0 0.0
    %766 = vmatpush1.msra.mxu0 0.0
    %767 = vmatprep.subr.mxu0 0.0
    %768 = vmatpush1.msra.mxu0 0.0
    %769 = vmatprep.subr.mxu0 0.0
    %770 = vmatpush1.msra.mxu0 0.0
    %771 = vmatprep.subr.mxu0 0.0
    %772 = vmatpush1.msra.mxu0 0.0
    %773 = vmatprep.subr.mxu0 0.0
    %774 = vmatpush1.msra.mxu0 0.0
    %775 = vmatprep.subr.mxu0 0.0
    %776 = vmatpush1.msra.mxu0 0.0
    %777 = vmatprep.subr.mxu0 0.0
    %778 = vmatpush1.msra.mxu0 0.0
    %779 = vmatprep.subr.mxu0 0.0
    %780 = vmatpush1.msra.mxu0 0.0
    %781 = vmatprep.subr.mxu0 0.0
    %782 = vmatpush1.msra.mxu0 0.0
    %783 = vmatprep.subr.mxu0 0.0
    %784 = vmatpush1.msra.mxu0 0.0
    %785 = vmatprep.subr.mxu0 0.0
    %786 = vmatpush1.msra.mxu0 0.0
    %787 = vmatprep.subr.mxu0 0.0
    %788 = vmatpush1.msra.mxu0 0.0
    %789 = vmatprep.subr.mxu0 0.0
    %790 = vmatpush1.msra.mxu0 0.0
    %791 = vmatprep.mubr.f32.mxu0 0.0
    %792 = vmatmul.mubr.f32.gmra.mrb[0].mxu0 %v725
    %v793 = vpop.f32.mrb[0].mxu0
    %v794 = vadd.f32 %v721, %v793
    %v795 = vpop.f32.mrb[0].mxu0
    %796 = vdwg.mxu0
    %s797 = scalar_lea.vmem %s7, 16
    %v798 = vld [vmem:[%s797] sm:$0xff]
    %v800 = vsel %vm327, %v798, 0
    %802 = vmatprep.subr.mxu0 0.0
    %803 = vmatpush1.msra.mxu0 %v638
    %804 = vmatprep.subr.mxu0 0.0
    %805 = vmatpush1.msra.mxu0 0.0
    %806 = vmatprep.subr.mxu0 0.0
    %807 = vmatpush1.msra.mxu0 0.0
    %808 = vmatprep.subr.mxu0 0.0
    %809 = vmatpush1.msra.mxu0 0.0
    %810 = vmatprep.subr.mxu0 0.0
    %811 = vmatpush1.msra.mxu0 0.0
    %812 = vmatprep.subr.mxu0 0.0
    %813 = vmatpush1.msra.mxu0 0.0
    %814 = vmatprep.subr.mxu0 0.0
    %815 = vmatpush1.msra.mxu0 0.0
    %816 = vmatprep.subr.mxu0 0.0
    %817 = vmatpush1.msra.mxu0 0.0
    %818 = vmatprep.subr.mxu0 0.0
    %819 = vmatpush1.msra.mxu0 0.0
    %820 = vmatprep.subr.mxu0 0.0
    %821 = vmatpush1.msra.mxu0 0.0
    %822 = vmatprep.subr.mxu0 0.0
    %823 = vmatpush1.msra.mxu0 0.0
    %824 = vmatprep.subr.mxu0 0.0
    %825 = vmatpush1.msra.mxu0 0.0
    %826 = vmatprep.subr.mxu0 0.0
    %827 = vmatpush1.msra.mxu0 0.0
    %828 = vmatprep.subr.mxu0 0.0
    %829 = vmatpush1.msra.mxu0 0.0
    %830 = vmatprep.subr.mxu0 0.0
    %831 = vmatpush1.msra.mxu0 0.0
    %832 = vmatprep.subr.mxu0 0.0
    %833 = vmatpush1.msra.mxu0 0.0
    %834 = vmatprep.subr.mxu0 0.0
    %835 = vmatpush1.msra.mxu0 0.0
    %836 = vmatprep.subr.mxu0 0.0
    %837 = vmatpush1.msra.mxu0 0.0
    %838 = vmatprep.subr.mxu0 0.0
    %839 = vmatpush1.msra.mxu0 0.0
    %840 = vmatprep.subr.mxu0 0.0
    %841 = vmatpush1.msra.mxu0 0.0
    %842 = vmatprep.subr.mxu0 0.0
    %843 = vmatpush1.msra.mxu0 0.0
    %844 = vmatprep.subr.mxu0 0.0
    %845 = vmatpush1.msra.mxu0 0.0
    %846 = vmatprep.subr.mxu0 0.0
    %847 = vmatpush1.msra.mxu0 0.0
    %848 = vmatprep.subr.mxu0 0.0
    %849 = vmatpush1.msra.mxu0 0.0
    %850 = vmatprep.subr.mxu0 0.0
    %851 = vmatpush1.msra.mxu0 0.0
    %852 = vmatprep.subr.mxu0 0.0
    %853 = vmatpush1.msra.mxu0 0.0
    %854 = vmatprep.subr.mxu0 0.0
    %855 = vmatpush1.msra.mxu0 0.0
    %856 = vmatprep.subr.mxu0 0.0
    %857 = vmatpush1.msra.mxu0 0.0
    %858 = vmatprep.subr.mxu0 0.0
    %859 = vmatpush1.msra.mxu0 0.0
    %860 = vmatprep.subr.mxu0 0.0
    %861 = vmatpush1.msra.mxu0 0.0
    %862 = vmatprep.subr.mxu0 0.0
    %863 = vmatpush1.msra.mxu0 0.0
    %864 = vmatprep.subr.mxu0 0.0
    %865 = vmatpush1.msra.mxu0 0.0
    %866 = vmatprep.mubr.f32.mxu0 0.0
    %867 = vmatmul.mubr.f32.gmra.mrb[0].mxu0 %v800
    %v868 = vpop.f32.mrb[0].mxu0
    %v869 = vadd.f32 0.0, %v868
    %v870 = vpop.f32.mrb[0].mxu0
    %871 = vdwg.mxu0
    %v872 = vadd.f32 %v794, %v869
    %v873 = vld [vmem:[%s8] sm:$0xff]
    %875 = vset.pattern.permute.xlu0 0
    %876 = vperm.xlu0 %875, %v873
    %v877 = vpop.permute.xlu0 %876
    %v879 = vadd.f32 %v872, %v877
    %v880 = vmax.f32 %v879, 0.0
    %881 = vrot.lane.b32.xlu0 %v880, 4
    %v882 = vpop.permute.xlu0 %881
    %v883 = vmul.f32 %v882, %v643
    %v884 = vld [vmem:[%s9] sm:$0xff]
    %885 = vrot.lane.b32.xlu0 %v880, 2
    %v886 = vpop.permute.xlu0 %885
    %v887 = vmul.f32 %v886, %v66
    %s888 = scalar_lea.vmem %s9, 8
    %v889 = vld [vmem:[%s888] sm:$0xff]
    %v891 = vsel %vm327, %v889, 0
    %893 = vmatprep.subr.mxu0 0.0
    %894 = vmatpush1.msra.mxu0 %v887
    %895 = vmatprep.subr.mxu0 0.0
    %896 = vmatpush1.msra.mxu0 0.0
    %897 = vmatprep.subr.mxu0 0.0
    %898 = vmatpush1.msra.mxu0 0.0
    %899 = vmatprep.subr.mxu0 0.0
    %900 = vmatpush1.msra.mxu0 0.0
    %901 = vmatprep.subr.mxu0 0.0
    %902 = vmatpush1.msra.mxu0 0.0
    %903 = vmatprep.subr.mxu0 0.0
    %904 = vmatpush1.msra.mxu0 0.0
    %905 = vmatprep.subr.mxu0 0.0
    %906 = vmatpush1.msra.mxu0 0.0
    %907 = vmatprep.subr.mxu0 0.0
    %908 = vmatpush1.msra.mxu0 0.0
    %909 = vmatprep.subr.mxu0 0.0
    %910 = vmatpush1.msra.mxu0 0.0
    %911 = vmatprep.subr.mxu0 0.0
    %912 = vmatpush1.msra.mxu0 0.0
    %913 = vmatprep.subr.mxu0 0.0
    %914 = vmatpush1.msra.mxu0 0.0
    %915 = vmatprep.subr.mxu0 0.0
    %916 = vmatpush1.msra.mxu0 0.0
    %917 = vmatprep.subr.mxu0 0.0
    %918 = vmatpush1.msra.mxu0 0.0
    %919 = vmatprep.subr.mxu0 0.0
    %920 = vmatpush1.msra.mxu0 0.0
    %921 = vmatprep.subr.mxu0 0.0
    %922 = vmatpush1.msra.mxu0 0.0
    %923 = vmatprep.subr.mxu0 0.0
    %924 = vmatpush1.msra.mxu0 0.0
    %925 = vmatprep.subr.mxu0 0.0
    %926 = vmatpush1.msra.mxu0 0.0
    %927 = vmatprep.subr.mxu0 0.0
    %928 = vmatpush1.msra.mxu0 0.0
    %929 = vmatprep.subr.mxu0 0.0
    %930 = vmatpush1.msra.mxu0 0.0
    %931 = vmatprep.subr.mxu0 0.0
    %932 = vmatpush1.msra.mxu0 0.0
    %933 = vmatprep.subr.mxu0 0.0
    %934 = vmatpush1.msra.mxu0 0.0
    %935 = vmatprep.subr.mxu0 0.0
    %936 = vmatpush1.msra.mxu0 0.0
    %937 = vmatprep.subr.mxu0 0.0
    %938 = vmatpush1.msra.mxu0 0.0
    %939 = vmatprep.subr.mxu0 0.0
    %940 = vmatpush1.msra.mxu0 0.0
    %941 = vmatprep.subr.mxu0 0.0
    %942 = vmatpush1.msra.mxu0 0.0
    %943 = vmatprep.subr.mxu0 0.0
    %944 = vmatpush1.msra.mxu0 0.0
    %945 = vmatprep.subr.mxu0 0.0
    %946 = vmatpush1.msra.mxu0 0.0
    %947 = vmatprep.subr.mxu0 0.0
    %948 = vmatpush1.msra.mxu0 0.0
    %949 = vmatprep.subr.mxu0 0.0
    %950 = vmatpush1.msra.mxu0 0.0
    %951 = vmatprep.subr.mxu0 0.0
    %952 = vmatpush1.msra.mxu0 0.0
    %953 = vmatprep.subr.mxu0 0.0
    %954 = vmatpush1.msra.mxu0 0.0
    %955 = vmatprep.subr.mxu0 0.0
    %956 = vmatpush1.msra.mxu0 0.0
    %957 = vmatprep.mubr.f32.mxu0 0.0
    %958 = vmatmul.mubr.f32.gmra.mrb[0].mxu0 %v891
    %v959 = vpop.f32.mrb[0].mxu0
    %v960 = vadd.f32 0.0, %v959
    %v961 = vpop.f32.mrb[0].mxu0
    %962 = vdwg.mxu0
    %v964 = vsel %vm327, %v884, 0
    %966 = vmatprep.subr.mxu0 0.0
    %967 = vmatpush1.msra.mxu0 %v883
    %968 = vmatprep.subr.mxu0 0.0
    %969 = vmatpush1.msra.mxu0 0.0
    %970 = vmatprep.subr.mxu0 0.0
    %971 = vmatpush1.msra.mxu0 0.0
    %972 = vmatprep.subr.mxu0 0.0
    %973 = vmatpush1.msra.mxu0 0.0
    %974 = vmatprep.subr.mxu0 0.0
    %975 = vmatpush1.msra.mxu0 0.0
    %976 = vmatprep.subr.mxu0 0.0
    %977 = vmatpush1.msra.mxu0 0.0
    %978 = vmatprep.subr.mxu0 0.0
    %979 = vmatpush1.msra.mxu0 0.0
    %980 = vmatprep.subr.mxu0 0.0
    %981 = vmatpush1.msra.mxu0 0.0
    %982 = vmatprep.subr.mxu0 0.0
    %983 = vmatpush1.msra.mxu0 0.0
    %984 = vmatprep.subr.mxu0 0.0
    %985 = vmatpush1.msra.mxu0 0.0
    %986 = vmatprep.subr.mxu0 0.0
    %987 = vmatpush1.msra.mxu0 0.0
    %988 = vmatprep.subr.mxu0 0.0
    %989 = vmatpush1.msra.mxu0 0.0
    %990 = vmatprep.subr.mxu0 0.0
    %991 = vmatpush1.msra.mxu0 0.0
    %992 = vmatprep.subr.mxu0 0.0
    %993 = vmatpush1.msra.mxu0 0.0
    %994 = vmatprep.subr.mxu0 0.0
    %995 = vmatpush1.msra.mxu0 0.0
    %996 = vmatprep.subr.mxu0 0.0
    %997 = vmatpush1.msra.mxu0 0.0
    %998 = vmatprep.subr.mxu0 0.0
    %999 = vmatpush1.msra.mxu0 0.0
    %1000 = vmatprep.subr.mxu0 0.0
    %1001 = vmatpush1.msra.mxu0 0.0
    %1002 = vmatprep.subr.mxu0 0.0
    %1003 = vmatpush1.msra.mxu0 0.0
    %1004 = vmatprep.subr.mxu0 0.0
    %1005 = vmatpush1.msra.mxu0 0.0
    %1006 = vmatprep.subr.mxu0 0.0
    %1007 = vmatpush1.msra.mxu0 0.0
    %1008 = vmatprep.subr.mxu0 0.0
    %1009 = vmatpush1.msra.mxu0 0.0
    %1010 = vmatprep.subr.mxu0 0.0
    %1011 = vmatpush1.msra.mxu0 0.0
    %1012 = vmatprep.subr.mxu0 0.0
    %1013 = vmatpush1.msra.mxu0 0.0
    %1014 = vmatprep.subr.mxu0 0.0
    %1015 = vmatpush1.msra.mxu0 0.0
    %1016 = vmatprep.subr.mxu0 0.0
    %1017 = vmatpush1.msra.mxu0 0.0
    %1018 = vmatprep.subr.mxu0 0.0
    %1019 = vmatpush1.msra.mxu0 0.0
    %1020 = vmatprep.subr.mxu0 0.0
    %1021 = vmatpush1.msra.mxu0 0.0
    %1022 = vmatprep.subr.mxu0 0.0
    %1023 = vmatpush1.msra.mxu0 0.0
    %1024 = vmatprep.subr.mxu0 0.0
    %1025 = vmatpush1.msra.mxu0 0.0
    %1026 = vmatprep.subr.mxu0 0.0
    %1027 = vmatpush1.msra.mxu0 0.0
    %1028 = vmatprep.subr.mxu0 0.0
    %1029 = vmatpush1.msra.mxu0 0.0
    %1030 = vmatprep.mubr.f32.mxu0 0.0
    %1031 = vmatmul.mubr.f32.gmra.mrb[0].mxu0 %v964
    %v1032 = vpop.f32.mrb[0].mxu0
    %v1033 = vadd.f32 %v960, %v1032
    %v1034 = vpop.f32.mrb[0].mxu0
    %1035 = vdwg.mxu0
    %s1036 = scalar_lea.vmem %s9, 16
    %v1037 = vld [vmem:[%s1036] sm:$0xff]
    %v1039 = vsel %vm327, %v1037, 0
    %1041 = vmatprep.subr.mxu0 0.0
    %1042 = vmatpush1.msra.mxu0 %v880
    %1043 = vmatprep.subr.mxu0 0.0
    %1044 = vmatpush1.msra.mxu0 0.0
    %1045 = vmatprep.subr.mxu0 0.0
    %1046 = vmatpush1.msra.mxu0 0.0
    %1047 = vmatprep.subr.mxu0 0.0
    %1048 = vmatpush1.msra.mxu0 0.0
    %1049 = vmatprep.subr.mxu0 0.0
    %1050 = vmatpush1.msra.mxu0 0.0
    %1051 = vmatprep.subr.mxu0 0.0
    %1052 = vmatpush1.msra.mxu0 0.0
    %1053 = vmatprep.subr.mxu0 0.0
    %1054 = vmatpush1.msra.mxu0 0.0
    %1055 = vmatprep.subr.mxu0 0.0
    %1056 = vmatpush1.msra.mxu0 0.0
    %1057 = vmatprep.subr.mxu0 0.0
    %1058 = vmatpush1.msra.mxu0 0.0
    %1059 = vmatprep.subr.mxu0 0.0
    %1060 = vmatpush1.msra.mxu0 0.0
    %1061 = vmatprep.subr.mxu0 0.0
    %1062 = vmatpush1.msra.mxu0 0.0
    %1063 = vmatprep.subr.mxu0 0.0
    %1064 = vmatpush1.msra.mxu0 0.0
    %1065 = vmatprep.subr.mxu0 0.0
    %1066 = vmatpush1.msra.mxu0 0.0
    %1067 = vmatprep.subr.mxu0 0.0
    %1068 = vmatpush1.msra.mxu0 0.0
    %1069 = vmatprep.subr.mxu0 0.0
    %1070 = vmatpush1.msra.mxu0 0.0
    %1071 = vmatprep.subr.mxu0 0.0
    %1072 = vmatpush1.msra.mxu0 0.0
    %1073 = vmatprep.subr.mxu0 0.0
    %1074 = vmatpush1.msra.mxu0 0.0
    %1075 = vmatprep.subr.mxu0 0.0
    %1076 = vmatpush1.msra.mxu0 0.0
    %1077 = vmatprep.subr.mxu0 0.0
    %1078 = vmatpush1.msra.mxu0 0.0
    %1079 = vmatprep.subr.mxu0 0.0
    %1080 = vmatpush1.msra.mxu0 0.0
    %1081 = vmatprep.subr.mxu0 0.0
    %1082 = vmatpush1.msra.mxu0 0.0
    %1083 = vmatprep.subr.mxu0 0.0
    %1084 = vmatpush1.msra.mxu0 0.0
    %1085 = vmatprep.subr.mxu0 0.0
    %1086 = vmatpush1.msra.mxu0 0.0
    %1087 = vmatprep.subr.mxu0 0.0
    %1088 = vmatpush1.msra.mxu0 0.0
    %1089 = vmatprep.subr.mxu0 0.0
    %1090 = vmatpush1.msra.mxu0 0.0
    %1091 = vmatprep.subr.mxu0 0.0
    %1092 = vmatpush1.msra.mxu0 0.0
    %1093 = vmatprep.subr.mxu0 0.0
    %1094 = vmatpush1.msra.mxu0 0.0
    %1095 = vmatprep.subr.mxu0 0.0
    %1096 = vmatpush1.msra.mxu0 0.0
    %1097 = vmatprep.subr.mxu0 0.0
    %1098 = vmatpush1.msra.mxu0 0.0
    %1099 = vmatprep.subr.mxu0 0.0
    %1100 = vmatpush1.msra.mxu0 0.0
    %1101 = vmatprep.subr.mxu0 0.0
    %1102 = vmatpush1.msra.mxu0 0.0
    %1103 = vmatprep.subr.mxu0 0.0
    %1104 = vmatpush1.msra.mxu0 0.0
    %1105 = vmatprep.mubr.f32.mxu0 0.0
    %1106 = vmatmul.mubr.f32.gmra.mrb[0].mxu0 %v1039
    %v1107 = vpop.f32.mrb[0].mxu0
    %v1108 = vadd.f32 0.0, %v1107
    %v1109 = vpop.f32.mrb[0].mxu0
    %1110 = vdwg.mxu0
    %v1111 = vadd.f32 %v1033, %v1108
    %v1112 = vld [vmem:[%s10] sm:$0xff]
    %1114 = vset.pattern.permute.xlu0 0
    %1115 = vperm.xlu0 %1114, %v1112
    %v1116 = vpop.permute.xlu0 %1115
    %v1118 = vadd.f32 %v1111, %v1116
    %v1119 = vmax.f32 %v1118, 0.0
    %v1120 = vadd.f32 %v1119, %v638
    %v1121 = vld [vmem:[%s11] sm:$0x1]
    %v1122 = vld [vmem:[#allocation2] sm:$0x1]
    %1124 = vset.pattern.permute.xlu0 0
    %1125 = vperm.xlu0 %1124, %v1122
    %v1126 = vpop.permute.xlu0 %1125
    %v1128 = vlaneseq
    %v1129 = vshrl.u32 %v1128, 7
    %v1130 = vsub.s32 0, %v1129
    %v1131 = vrot.slane %v1126, %v1130
    %v1133 = vsel %vm327, %v1121, 0
    %1135 = vmatprep.subr.mxu0 0.0
    %1136 = vmatpush1.msra.mxu0 %v1120
    %1137 = vmatprep.subr.mxu0 0.0
    %1138 = vmatpush1.msra.mxu0 0.0
    %1139 = vmatprep.subr.mxu0 0.0
    %1140 = vmatpush1.msra.mxu0 0.0
    %1141 = vmatprep.subr.mxu0 0.0
    %1142 = vmatpush1.msra.mxu0 0.0
    %1143 = vmatprep.subr.mxu0 0.0
    %1144 = vmatpush1.msra.mxu0 0.0
    %1145 = vmatprep.subr.mxu0 0.0
    %1146 = vmatpush1.msra.mxu0 0.0
    %1147 = vmatprep.subr.mxu0 0.0
    %1148 = vmatpush1.msra.mxu0 0.0
    %1149 = vmatprep.subr.mxu0 0.0
    %1150 = vmatpush1.msra.mxu0 0.0
    %1151 = vmatprep.subr.mxu0 0.0
    %1152 = vmatpush1.msra.mxu0 0.0
    %1153 = vmatprep.subr.mxu0 0.0
    %1154 = vmatpush1.msra.mxu0 0.0
    %1155 = vmatprep.subr.mxu0 0.0
    %1156 = vmatpush1.msra.mxu0 0.0
    %1157 = vmatprep.subr.mxu0 0.0
    %1158 = vmatpush1.msra.mxu0 0.0
    %1159 = vmatprep.subr.mxu0 0.0
    %1160 = vmatpush1.msra.mxu0 0.0
    %1161 = vmatprep.subr.mxu0 0.0
    %1162 = vmatpush1.msra.mxu0 0.0
    %1163 = vmatprep.subr.mxu0 0.0
    %1164 = vmatpush1.msra.mxu0 0.0
    %1165 = vmatprep.subr.mxu0 0.0
    %1166 = vmatpush1.msra.mxu0 0.0
    %1167 = vmatprep.subr.mxu0 0.0
    %1168 = vmatpush1.msra.mxu0 0.0
    %1169 = vmatprep.subr.mxu0 0.0
    %1170 = vmatpush1.msra.mxu0 0.0
    %1171 = vmatprep.subr.mxu0 0.0
    %1172 = vmatpush1.msra.mxu0 0.0
    %1173 = vmatprep.subr.mxu0 0.0
    %1174 = vmatpush1.msra.mxu0 0.0
    %1175 = vmatprep.subr.mxu0 0.0
    %1176 = vmatpush1.msra.mxu0 0.0
    %1177 = vmatprep.subr.mxu0 0.0
    %1178 = vmatpush1.msra.mxu0 0.0
    %1179 = vmatprep.subr.mxu0 0.0
    %1180 = vmatpush1.msra.mxu0 0.0
    %1181 = vmatprep.subr.mxu0 0.0
    %1182 = vmatpush1.msra.mxu0 0.0
    %1183 = vmatprep.subr.mxu0 0.0
    %1184 = vmatpush1.msra.mxu0 0.0
    %1185 = vmatprep.subr.mxu0 0.0
    %1186 = vmatpush1.msra.mxu0 0.0
    %1187 = vmatprep.subr.mxu0 0.0
    %1188 = vmatpush1.msra.mxu0 0.0
    %1189 = vmatprep.subr.mxu0 0.0
    %1190 = vmatpush1.msra.mxu0 0.0
    %1191 = vmatprep.subr.mxu0 0.0
    %1192 = vmatpush1.msra.mxu0 0.0
    %1193 = vmatprep.subr.mxu0 0.0
    %1194 = vmatpush1.msra.mxu0 0.0
    %1195 = vmatprep.subr.mxu0 0.0
    %1196 = vmatpush1.msra.mxu0 0.0
    %1197 = vmatprep.subr.mxu0 0.0
    %1198 = vmatpush1.msra.mxu0 0.0
    %1199 = vmatprep.mubr.f32.mxu0 0.0
    %1200 = vmatmul.mubr.f32.gmra.mrb[0].mxu0 %v1133
    %v1201 = vpop.f32.mrb[0].mxu0
    %v1202 = vadd.f32 %v1131, %v1201
    %v1203 = vpop.f32.mrb[0].mxu0
    %1204 = vdwg.mxu0
    %1205 = vst [vmem:[#allocation3] sm:$0x1] %v1202
    // Predicated region
    $region54: #{tpu_custom_call.1} parent=1 // pred_check
      _
    $region55: #{tpu_custom_call.1} parent=1 // pred_check_branch
      %1207 = sbr.rel (0) target = $region57
    $region56: #{tpu_custom_call.1} parent=1 // pred_region
      %s1209 = ssub.s32 16, 16
      %1210 = vsyncadd [#allocation4], %s1209
      %s1212 = sshll.u32 [#allocation3], 4
      %s1213 = int_to_ptr.vmem [resolvable:$true] %s1212
      %1215 = dma.vmem_to_hbm [thread:$0]  %s1213, 16, %s13, [#allocation4]
    $region57: #{tpu_custom_call.1} parent=1 // pred_fallthru
      _
    // Predicated region
    $region58: #{tpu_custom_call.1} parent=1 // pred_check
      _
    $region59: #{tpu_custom_call.1} parent=1 // pred_check_branch
      %1217 = sbr.rel (0) target = $region61
    $region60: #{tpu_custom_call.1} parent=1 // pred_region
      %1218 = dma.done [#allocation4], 16
    $region61: #{tpu_custom_call.1} parent=1 // pred_fallthru
      _
    %1219 = vsyncpa [#allocation4], 1

</llo_original>
